<compile_context>
chip_gen: v6e
topology: v6e:2x2x1
jax: 0.10.0
libtpu: 0.0.40
codegen_flags: <defaults>
</compile_context>

<pallas_src>
import functools

import jax
import jax.numpy as jnp
from jax.experimental import pallas as pl
from jax.experimental.pallas import tpu as pltpu


def _fused_layers_kernel(x_ref, r_ref, ln1_g_ref, ln1_b_ref, wqkv_ref, wo_ref,
                         a_ref, c_ref, ln2_g_ref, ln2_b_ref, w1_ref, b1_ref,
                         w2_ref, b2_ref, o_ref, *, heads, dim_head, num_patches):
    eps = 1e-5
    f32 = jnp.float32
    bf16 = jnp.bfloat16
    scale = dim_head ** -0.5

    # depth is the inner ("arbitrary") grid axis; the activation lives in the
    # resident output block across it (accumulator / carry pattern).
    @pl.when(pl.program_id(1) == 0)
    def _():
        o_ref[0] = x_ref[0]

    x = o_ref[0]                       # (N, D) f32 carried activation
    r_tt = r_ref[0]                    # (T, T) f32 time distances (per time step)
    n, _d = x.shape
    t = r_tt.shape[0]

    # ---- time-aware mask at (H, T, T), then expand to (H, N, N) ------------
    # sigmoid(|c| - |a| R) == 1/(1 + exp(|a| R - |c|)) on the EUP; evaluating it
    # at (T, T) resolution cuts the EUP sigmoid count and the a*R multiply by
    # num_patches^2 and never materializes an (H, N, N) pre-mask tensor.
    a_abs = jnp.abs(a_ref[0])          # (H, 1, 1)
    c_abs = jnp.abs(c_ref[0])          # (H, 1, 1)
    tmask_tt = jax.nn.sigmoid(c_abs - a_abs * r_tt[None])        # (H, T, T)

    # repeat_interleave(num_patches) on both axes via exact 0/1 selection
    # matmuls.  (Kept as matmuls rather than broadcast+reshape: layout-safe in
    # Mosaic, and the O(H*N^2*T) MACs are small next to the O(H*N^2*dh)
    # attention matmuls; the N^2-scale EUP work is what mattered and is gone.)
    row = jax.lax.broadcasted_iota(jnp.int32, (n, t), 0)
    col = jax.lax.broadcasted_iota(jnp.int32, (n, t), 1)
    sel_q = ((row >= col * num_patches) &
             (row < (col + 1) * num_patches)).astype(f32)        # (N, T)
    row_t = jax.lax.broadcasted_iota(jnp.int32, (t, n), 0)
    col_n = jax.lax.broadcasted_iota(jnp.int32, (t, n), 1)
    sel_k = ((col_n >= row_t * num_patches) &
             (col_n < (row_t + 1) * num_patches)).astype(f32)    # (T, N)
    sel_qh = jnp.broadcast_to(sel_q[None], (heads, n, t))
    sel_kh = jnp.broadcast_to(sel_k[None], (heads, t, n))
    m1 = jnp.einsum('htu,hun->htn', tmask_tt, sel_kh,
                    preferred_element_type=f32)                  # (H, T, N)
    tmask = jnp.einsum('hnt,htm->hnm', sel_qh, m1,
                       preferred_element_type=f32)               # (H, N, N)

    # ---- TimeAwareAttention -------------------------------------------------
    mu = jnp.mean(x, axis=-1, keepdims=True)
    var = jnp.mean((x - mu) ** 2, axis=-1, keepdims=True)
    xn = ((x - mu) * jax.lax.rsqrt(var + eps) * ln1_g_ref[0] + ln1_b_ref[0]
          ).astype(bf16)                                         # (N, D) bf16

    # Single lane-dense QKV projection (output width 3*inner), then split the
    # fused lane dim into heads with static slices + a leading-axis stack.
    qkv = jnp.dot(xn, wqkv_ref[0], preferred_element_type=f32).astype(bf16)

    def head_block(g):
        return qkv[:, g * dim_head:(g + 1) * dim_head]           # (N, dh)

    q = jnp.stack([head_block(h) for h in range(heads)])             # (H, N, dh)
    k = jnp.stack([head_block(heads + h) for h in range(heads)])     # (H, N, dh)
    v = jnp.stack([head_block(2 * heads + h) for h in range(heads)]) # (H, N, dh)

    dots = jnp.einsum('hnd,hmd->hnm', q, k,
                      preferred_element_type=f32) * scale        # (H, N, N) f32
    sd = jnp.maximum(dots, 0.0) * tmask                          # ReLU, then time mask

    # Softmax over keys; denominator via EUP approximate reciprocal.
    m = jnp.max(sd, axis=-1, keepdims=True)
    e = jnp.exp(sd - m)
    attn = e * pl.reciprocal(jnp.sum(e, axis=-1, keepdims=True), approx=True)

    o_h = jnp.einsum('hnm,hmd->hnd', attn.astype(bf16), v,
                     preferred_element_type=f32)                 # (H, N, dh)
    # Relayout heads back into lanes and do one lane-dense (N, inner)@(inner, D).
    o_cat = jnp.concatenate([o_h[h].astype(bf16) for h in range(heads)],
                            axis=-1)                             # (N, inner) bf16
    x = x + jnp.dot(o_cat, wo_ref[0], preferred_element_type=f32)
    # TODO(synk): nn.Dropout treated as identity (inference mode).

    # ---- FeedForward --------------------------------------------------------
    mu2 = jnp.mean(x, axis=-1, keepdims=True)
    var2 = jnp.mean((x - mu2) ** 2, axis=-1, keepdims=True)
    xn2 = ((x - mu2) * jax.lax.rsqrt(var2 + eps) * ln2_g_ref[0] + ln2_b_ref[0]
           ).astype(bf16)
    h1 = jnp.dot(xn2, w1_ref[0], preferred_element_type=f32) + b1_ref[0]
    # TODO(synk): tanh-form GELU (reference nn.GELU() is the erf form; <~1e-3 diff,
    # keeps the transcendental on the EUP slot).
    h1 = 0.5 * h1 * (1.0 + jnp.tanh(0.7978845608028654 *
                                    (h1 + 0.044715 * h1 * h1 * h1)))
    ff = jnp.dot(h1.astype(bf16), w2_ref[0], preferred_element_type=f32) + b2_ref[0]

    o_ref[0] = x + ff                                            # residual 2, carried
    # TODO(synk): for large N add flash-style KV-block tiling (query-block grid axis +
    # online softmax) so the (H, N, N) tensors never live whole in VMEM (v7x: 64 MiB/core).


def _prep_layer(p):
    """Pure index plumbing (outside the kernel): cast MXU operands to bf16, reshape a/c."""
    bf16 = jnp.bfloat16
    heads = p['a'].shape[-1]
    return dict(
        ln1_g=p['ln1_g'], ln1_b=p['ln1_b'],
        wqkv=p['w_qkv'].astype(bf16),      # (D, 3*inner), [q | k | v], head-major within each part
        wo=p['w_out'].astype(bf16),        # (inner, D)
        a=p['a'].reshape(heads, 1, 1), c=p['c'].reshape(heads, 1, 1),
        ln2_g=p['ln2_g'], ln2_b=p['ln2_b'],
        w1=p['w1'].astype(bf16), b1=p['b1'],
        w2=p['w2'].astype(bf16), b2=p['b2'])


_PARAM_ORDER = ('ln1_g', 'ln1_b', 'wqkv', 'wo', 'a', 'c',
                'ln2_g', 'ln2_b', 'w1', 'b1', 'w2', 'b2')


def _vmem_limit_bytes():
    # Generation-aware scoped-VMEM budget: ~3/4 of physical per-core VMEM
    # (96 MiB on v5e/v6e, 48 MiB on v7x) so double buffers keep headroom.
    try:
        return int(pltpu.get_tpu_info().vmem_capacity_bytes * 3 // 4)
    except Exception:
        return 48 * 1024 * 1024  # conservative: fits every generation


def time_aware_transformer(x, R, layer_params, *, heads, dim_head):
    """x: (B, N, D) f32, R: (B, T, T) f32, N = T * num_patches."""
    B, N, D = x.shape
    T = R.shape[-1]
    num_patches = N // T
    depth = len(layer_params)

    preps = [_prep_layer(p) for p in layer_params]
    stacked = [jnp.stack([lp[k] for lp in preps], axis=0) for k in _PARAM_ORDER]

    kernel = functools.partial(_fused_layers_kernel, heads=heads,
                               dim_head=dim_head, num_patches=num_patches)

    def wspec(arr):
        nd = arr.ndim
        # Per-layer weight block; its index follows the depth grid axis, so the
        # pipeline prefetches the next layer's weights while this one computes.
        return pl.BlockSpec((1,) + arr.shape[1:],
                            lambda b, d, _nd=nd: (d,) + (0,) * (_nd - 1))

    in_specs = [pl.BlockSpec((1, N, D), lambda b, d: (b, 0, 0)),   # x: one batch block
                pl.BlockSpec((1, T, T), lambda b, d: (b, 0, 0))]   # R at (T, T), never (N, N)
    in_specs += [wspec(w) for w in stacked]
    out_spec = pl.BlockSpec((1, N, D), lambda b, d: (b, 0, 0))     # resident across depth

    return pl.pallas_call(
        kernel,
        out_shape=jax.ShapeDtypeStruct((B, N, D), jnp.float32),
        grid=(B, depth),
        in_specs=in_specs,
        out_specs=out_spec,
        compiler_params=pltpu.CompilerParams(
            dimension_semantics=("parallel", "arbitrary"),  # batches independent, depth carried
            vmem_limit_bytes=_vmem_limit_bytes()),
    )(x, R, *stacked)


def init_params(key, *, depth, dim, heads, dim_head, mlp_dim):
    inner = heads * dim_head
    layers = []
    for _ in range(depth):
        key, *ks = jax.random.split(key, 7)
        layers.append(dict(
            ln1_g=jnp.ones((1, dim), jnp.float32),
            ln1_b=jnp.zeros((1, dim), jnp.float32),
            w_qkv=0.05 * jax.random.normal(ks[0], (dim, 3 * inner), jnp.float32),
            w_out=0.05 * jax.random.normal(ks[1], (inner, dim), jnp.float32),
            a=jax.random.uniform(ks[2], (1, heads), jnp.float32),          # rand(heads)
            c=12.0 * jax.random.uniform(ks[3], (1, heads), jnp.float32),   # 12*rand(heads)
            ln2_g=jnp.ones((1, dim), jnp.float32),
            ln2_b=jnp.zeros((1, dim), jnp.float32),
            w1=0.05 * jax.random.normal(ks[4], (dim, mlp_dim), jnp.float32),
            b1=jnp.zeros((1, mlp_dim), jnp.float32),
            w2=0.05 * jax.random.normal(ks[5], (mlp_dim, dim), jnp.float32),
            b2=jnp.zeros((1, dim), jnp.float32),
        ))
    return layers


def _reference_transformer(x, R, layer_params, *, heads, dim_head, num_patches):
    """Pure-JAX f32 reference mirroring the PyTorch module (inference mode)."""
    def layernorm(v, g, b):
        mu = jnp.mean(v, axis=-1, keepdims=True)
        var = jnp.mean((v - mu) ** 2, axis=-1, keepdims=True)
        return (v - mu) * jax.lax.rsqrt(var + 1e-5) * g + b

    B, N, _ = x.shape
    scale = dim_head ** -0.5
    for p in layer_params:
        xn = layernorm(x, p['ln1_g'], p['ln1_b'])
        qkv = xn @ p['w_qkv']
        q, k, v = jnp.split(qkv, 3, axis=-1)

        def split_heads(t):
            return t.reshape(B, N, heads, dim_head).transpose(0, 2, 1, 3)

        q, k, v = split_heads(q), split_heads(k), split_heads(v)
        dots = jnp.einsum('bhnd,bhmd->bhnm', q, k) * scale
        a = jnp.abs(p['a']).reshape(1, heads, 1, 1)
        c = jnp.abs(p['c']).reshape(1, heads, 1, 1)
        mask = 1.0 / (1.0 + jnp.exp(a * R[:, None] - c))
        mask = jnp.repeat(jnp.repeat(mask, num_patches, axis=2), num_patches, axis=3)
        sd = jnp.maximum(dots, 0.0) * mask
        attn = jax.nn.softmax(sd, axis=-1)
        o = jnp.einsum('bhnm,bhmd->bhnd', attn, v)
        o = o.transpose(0, 2, 1, 3).reshape(B, N, heads * dim_head)
        x = x + o @ p['w_out']

        xn2 = layernorm(x, p['ln2_g'], p['ln2_b'])
        h = xn2 @ p['w1'] + p['b1']
        h = jax.nn.gelu(h, approximate=False)
        x = x + (h @ p['w2'] + p['b2'])
    return x


if __name__ == "__main__":
    # Small config consistent with the module: dim=32, depth=2, heads=4,
    # dim_head=8, mlp_dim=64, qkv_bias=False, T=4 time steps, 2 patches each.
    B, T, num_patches = 2, 4, 2
    N = T * num_patches            # 8 tokens
    dim, depth, heads, dim_head, mlp_dim = 32, 2, 4, 8, 64

    key = jax.random.PRNGKey(0)
    key, kx, kt = jax.random.split(key, 3)

    x = jax.random.normal(kx, (B, N, dim), jnp.float32)
    times = 10.0 * jax.random.uniform(kt, (B, T), jnp.float32)
    # R exactly as TimeDistanceViT.forward builds it: R[b, i, j] = |times[b,0] - times[b,i]|
    R = jnp.asarray(
        jnp.broadcast_to(jnp.abs(times[:, :1] - times)[:, :, None], (B, T, T)),
        jnp.float32)

    params = init_params(key, depth=depth, dim=dim, heads=heads,
                         dim_head=dim_head, mlp_dim=mlp_dim)

    out = time_aware_transformer(x, R, params, heads=heads, dim_head=dim_head)
    out = jax.block_until_ready(out)

    ref = _reference_transformer(x, R, params, heads=heads, dim_head=dim_head,
                                 num_patches=num_patches)
    assert out.shape == (B, N, dim)
    assert bool(jnp.all(jnp.isfinite(out)))
    assert bool(jnp.allclose(out, ref, rtol=3e-2, atol=3e-2)), float(
        jnp.max(jnp.abs(out - ref)))
    print("KERNEL_OK")
</pallas_src>

<mosaic_0001>
module attributes {stable_mosaic.version = 11 : i64} {
  func.func @_fused_layers_kernel(%arg0: i32, %arg1: i32, %arg2: memref<1x8x32xf32, #tpu.memory_space<vmem>>, %arg3: memref<1x4x4xf32, #tpu.memory_space<vmem>>, %arg4: memref<1x1x32xf32, #tpu.memory_space<vmem>>, %arg5: memref<1x1x32xf32, #tpu.memory_space<vmem>>, %arg6: memref<1x32x96xbf16, #tpu.memory_space<vmem>>, %arg7: memref<1x32x32xbf16, #tpu.memory_space<vmem>>, %arg8: memref<1x4x1x1xf32, #tpu.memory_space<vmem>>, %arg9: memref<1x4x1x1xf32, #tpu.memory_space<vmem>>, %arg10: memref<1x1x32xf32, #tpu.memory_space<vmem>>, %arg11: memref<1x1x32xf32, #tpu.memory_space<vmem>>, %arg12: memref<1x32x64xbf16, #tpu.memory_space<vmem>>, %arg13: memref<1x1x64xf32, #tpu.memory_space<vmem>>, %arg14: memref<1x64x32xbf16, #tpu.memory_space<vmem>>, %arg15: memref<1x1x32xf32, #tpu.memory_space<vmem>>, %arg16: memref<1x8x32xf32, #tpu.memory_space<vmem>>) attributes {dimension_semantics = [#tpu.dimension_semantics<parallel>, #tpu.dimension_semantics<arbitrary>], iteration_bounds = array<i64: 2, 2>, scalar_prefetch = 0 : i64, scratch_operands = 0 : i64, tpu.core_type = #tpu.core_type<tc>, window_params = [{transform_indices = @transform_0, window_bounds = array<i64: 1, 8, 32>}, {transform_indices = @transform_1, window_bounds = array<i64: 1, 4, 4>}, {transform_indices = @transform_2, window_bounds = array<i64: 1, 1, 32>}, {transform_indices = @transform_3, window_bounds = array<i64: 1, 1, 32>}, {transform_indices = @transform_4, window_bounds = array<i64: 1, 32, 96>}, {transform_indices = @transform_5, window_bounds = array<i64: 1, 32, 32>}, {transform_indices = @transform_6, window_bounds = array<i64: 1, 4, 1, 1>}, {transform_indices = @transform_7, window_bounds = array<i64: 1, 4, 1, 1>}, {transform_indices = @transform_8, window_bounds = array<i64: 1, 1, 32>}, {transform_indices = @transform_9, window_bounds = array<i64: 1, 1, 32>}, {transform_indices = @transform_10, window_bounds = array<i64: 1, 32, 64>}, {transform_indices = @transform_11, window_bounds = array<i64: 1, 1, 64>}, {transform_indices = @transform_12, window_bounds = array<i64: 1, 64, 32>}, {transform_indices = @transform_13, window_bounds = array<i64: 1, 1, 32>}, {transform_indices = @transform_14, window_bounds = array<i64: 1, 8, 32>}]} {
    %c0_i32 = arith.constant 0 : i32
    %0 = arith.cmpi eq, %arg1, %c0_i32 : i32
    %1 = arith.extui %0 : i1 to i32
    %c0_i32_0 = arith.constant 0 : i32
    %2 = arith.cmpi ne, %1, %c0_i32_0 : i32
    scf.if %2 {
      %c0_77 = arith.constant 0 : index
      %c0_78 = arith.constant 0 : index
      %c0_79 = arith.constant 0 : index
      %210 = vector.load %arg2[%c0_77, %c0_78, %c0_79] : memref<1x8x32xf32, #tpu.memory_space<vmem>>, vector<1x8x32xf32>
      %211 = vector.shape_cast %210 : vector<1x8x32xf32> to vector<8x32xf32>
      %c0_80 = arith.constant 0 : index
      %c0_81 = arith.constant 0 : index
      %c0_82 = arith.constant 0 : index
      %212 = vector.load %arg16[%c0_80, %c0_81, %c0_82] : memref<1x8x32xf32, #tpu.memory_space<vmem>>, vector<1x8x32xf32>
      %213 = vector.shape_cast %212 : vector<1x8x32xf32> to vector<8x32xf32>
      %214 = vector.shape_cast %211 : vector<8x32xf32> to vector<1x8x32xf32>
      tpu.vector_store %arg16[%c0_80, %c0_81, %c0_82], %214 {strides = array<i32>} : memref<1x8x32xf32, #tpu.memory_space<vmem>>, vector<1x8x32xf32>,
    } else {
    }
    %c0 = arith.constant 0 : index
    %c0_1 = arith.constant 0 : index
    %c0_2 = arith.constant 0 : index
    %3 = vector.load %arg16[%c0, %c0_1, %c0_2] : memref<1x8x32xf32, #tpu.memory_space<vmem>>, vector<1x8x32xf32>
    %4 = vector.shape_cast %3 : vector<1x8x32xf32> to vector<8x32xf32>
    %c0_3 = arith.constant 0 : index
    %c0_4 = arith.constant 0 : index
    %c0_5 = arith.constant 0 : index
    %5 = vector.load %arg3[%c0_3, %c0_4, %c0_5] : memref<1x4x4xf32, #tpu.memory_space<vmem>>, vector<1x4x4xf32>
    %6 = vector.shape_cast %5 : vector<1x4x4xf32> to vector<4x4xf32>
    %c0_6 = arith.constant 0 : index
    %c0_7 = arith.constant 0 : index
    %c0_8 = arith.constant 0 : index
    %c0_9 = arith.constant 0 : index
    %7 = vector.load %arg8[%c0_6, %c0_7, %c0_8, %c0_9] : memref<1x4x1x1xf32, #tpu.memory_space<vmem>>, vector<1x4x1x1xf32>
    %8 = vector.shape_cast %7 : vector<1x4x1x1xf32> to vector<4x1x1xf32>
    %9 = math.absf %8 : vector<4x1x1xf32>
    %c0_10 = arith.constant 0 : index
    %c0_11 = arith.constant 0 : index
    %c0_12 = arith.constant 0 : index
    %c0_13 = arith.constant 0 : index
    %10 = vector.load %arg9[%c0_10, %c0_11, %c0_12, %c0_13] : memref<1x4x1x1xf32, #tpu.memory_space<vmem>>, vector<1x4x1x1xf32>
    %11 = vector.shape_cast %10 : vector<1x4x1x1xf32> to vector<4x1x1xf32>
    %12 = math.absf %11 : vector<4x1x1xf32>
    %13 = vector.shape_cast %6 : vector<4x4xf32> to vector<1x4x4xf32>
    %14 = vector.broadcast %9 : vector<4x1x1xf32> to vector<4x4x4xf32>
    %15 = vector.broadcast %13 : vector<1x4x4xf32> to vector<4x4x4xf32>
    %16 = arith.mulf %14, %15 : vector<4x4x4xf32>
    %17 = vector.broadcast %12 : vector<4x1x1xf32> to vector<4x4x4xf32>
    %18 = arith.subf %17, %16 : vector<4x4x4xf32>
    %19 = arith.negf %18 : vector<4x4x4xf32>
    %20 = math.exp %19 : vector<4x4x4xf32>
    %cst = arith.constant 1.000000e+00 : f32
    %21 = vector.broadcast %cst : f32 to vector<4x4x4xf32>
    %22 = arith.addf %21, %20 : vector<4x4x4xf32>
    %23 = arith.divf %21, %22 : vector<4x4x4xf32>
    %24 = tpu.iota {dimensions = array<i32: 0>} : vector<8x4xi32>
    %25 = tpu.iota {dimensions = array<i32: 1>} : vector<8x4xi32>
    %c2_i32 = arith.constant 2 : i32
    %26 = vector.broadcast %c2_i32 : i32 to vector<8x4xi32>
    %27 = arith.muli %25, %26 : vector<8x4xi32>
    %28 = arith.cmpi sge, %24, %27 : vector<8x4xi32>
    %c1_i32 = arith.constant 1 : i32
    %29 = vector.broadcast %c1_i32 : i32 to vector<8x4xi32>
    %30 = arith.addi %25, %29 : vector<8x4xi32>
    %c2_i32_14 = arith.constant 2 : i32
    %31 = vector.broadcast %c2_i32_14 : i32 to vector<8x4xi32>
    %32 = arith.muli %30, %31 : vector<8x4xi32>
    %33 = arith.cmpi slt, %24, %32 : vector<8x4xi32>
    %34 = arith.andi %28, %33 : vector<8x4xi1>
    %35 = arith.extui %34 : vector<8x4xi1> to vector<8x4xi32>
    %36 = arith.sitofp %35 : vector<8x4xi32> to vector<8x4xf32>
    %37 = tpu.iota {dimensions = array<i32: 0>} : vector<4x8xi32>
    %38 = tpu.iota {dimensions = array<i32: 1>} : vector<4x8xi32>
    %c2_i32_15 = arith.constant 2 : i32
    %39 = vector.broadcast %c2_i32_15 : i32 to vector<4x8xi32>
    %40 = arith.muli %37, %39 : vector<4x8xi32>
    %41 = arith.cmpi sge, %38, %40 : vector<4x8xi32>
    %c1_i32_16 = arith.constant 1 : i32
    %42 = vector.broadcast %c1_i32_16 : i32 to vector<4x8xi32>
    %43 = arith.addi %37, %42 : vector<4x8xi32>
    %c2_i32_17 = arith.constant 2 : i32
    %44 = vector.broadcast %c2_i32_17 : i32 to vector<4x8xi32>
    %45 = arith.muli %43, %44 : vector<4x8xi32>
    %46 = arith.cmpi slt, %38, %45 : vector<4x8xi32>
    %47 = arith.andi %41, %46 : vector<4x8xi1>
    %48 = arith.extui %47 : vector<4x8xi1> to vector<4x8xi32>
    %49 = arith.sitofp %48 : vector<4x8xi32> to vector<4x8xf32>
    %50 = vector.shape_cast %36 : vector<8x4xf32> to vector<1x8x4xf32>
    %51 = vector.shape_cast %50 : vector<1x8x4xf32> to vector<1x8x4xf32>
    %52 = vector.broadcast %51 : vector<1x8x4xf32> to vector<4x8x4xf32>
    %53 = vector.shape_cast %49 : vector<4x8xf32> to vector<1x4x8xf32>
    %54 = vector.shape_cast %53 : vector<1x4x8xf32> to vector<1x4x8xf32>
    %55 = vector.broadcast %54 : vector<1x4x8xf32> to vector<4x4x8xf32>
    "tpu.trace_start"() <{level = 10 : i32, message = "htu,hun->htn"}> : () -> ()
    %cst_18 = arith.constant dense<0.000000e+00> : vector<4x4x8xf32>
    %56 = tpu.matmul %23, %55, %cst_18 {dimension_numbers = #tpu.dot_dimension_numbers<[2], [1], [1], [2], [0, 0, 0, 1, 1, 2], [0], [0]>} : vector<4x4x4xf32>, vector<4x4x8xf32>, vector<4x4x8xf32> -> vector<4x4x8xf32>
    "tpu.trace_stop"() : () -> ()
    "tpu.trace_start"() <{level = 10 : i32, message = "hnt,htm->hnm"}> : () -> ()
    %cst_19 = arith.constant dense<0.000000e+00> : vector<4x8x8xf32>
    %57 = tpu.matmul %52, %56, %cst_19 {dimension_numbers = #tpu.dot_dimension_numbers<[2], [1], [1], [2], [0, 0, 0, 1, 1, 2], [0], [0]>} : vector<4x8x4xf32>, vector<4x4x8xf32>, vector<4x8x8xf32> -> vector<4x8x8xf32>
    "tpu.trace_stop"() : () -> ()
    %cst_20 = arith.constant dense<0.000000e+00> : vector<8xf32>
    %58 = vector.multi_reduction <add>, %4, %cst_20 [1] : vector<8x32xf32> to vector<8xf32>
    %59 = vector.shape_cast %58 : vector<8xf32> to vector<8x1xf32>
    %cst_21 = arith.constant 3.200000e+01 : f32
    %60 = vector.broadcast %cst_21 : f32 to vector<8x1xf32>
    %61 = arith.divf %59, %60 : vector<8x1xf32>
    %62 = vector.broadcast %61 : vector<8x1xf32> to vector<8x32xf32>
    %63 = arith.subf %4, %62 : vector<8x32xf32>
    %64 = arith.mulf %63, %63 : vector<8x32xf32>
    %cst_22 = arith.constant dense<0.000000e+00> : vector<8xf32>
    %65 = vector.multi_reduction <add>, %64, %cst_22 [1] : vector<8x32xf32> to vector<8xf32>
    %66 = vector.shape_cast %65 : vector<8xf32> to vector<8x1xf32>
    %cst_23 = arith.constant 3.200000e+01 : f32
    %67 = vector.broadcast %cst_23 : f32 to vector<8x1xf32>
    %68 = arith.divf %66, %67 : vector<8x1xf32>
    %69 = vector.broadcast %61 : vector<8x1xf32> to vector<8x32xf32>
    %70 = arith.subf %4, %69 : vector<8x32xf32>
    %cst_24 = arith.constant 9.99999974E-6 : f32
    %71 = vector.broadcast %cst_24 : f32 to vector<8x1xf32>
    %72 = arith.addf %68, %71 : vector<8x1xf32>
    %73 = math.rsqrt %72 : vector<8x1xf32>
    %74 = vector.broadcast %73 : vector<8x1xf32> to vector<8x32xf32>
    %75 = arith.mulf %70, %74 : vector<8x32xf32>
    %c0_25 = arith.constant 0 : index
    %c0_26 = arith.constant 0 : index
    %c0_27 = arith.constant 0 : index
    %76 = vector.load %arg4[%c0_25, %c0_26, %c0_27] : memref<1x1x32xf32, #tpu.memory_space<vmem>>, vector<1x1x32xf32>
    %77 = vector.shape_cast %76 : vector<1x1x32xf32> to vector<1x32xf32>
    %78 = vector.broadcast %77 : vector<1x32xf32> to vector<8x32xf32>
    %79 = arith.mulf %75, %78 : vector<8x32xf32>
    %c0_28 = arith.constant 0 : index
    %c0_29 = arith.constant 0 : index
    %c0_30 = arith.constant 0 : index
    %80 = vector.load %arg5[%c0_28, %c0_29, %c0_30] : memref<1x1x32xf32, #tpu.memory_space<vmem>>, vector<1x1x32xf32>
    %81 = vector.shape_cast %80 : vector<1x1x32xf32> to vector<1x32xf32>
    %82 = vector.broadcast %81 : vector<1x32xf32> to vector<8x32xf32>
    %83 = arith.addf %79, %82 : vector<8x32xf32>
    %84 = arith.truncf %83 : vector<8x32xf32> to vector<8x32xbf16>
    %c0_31 = arith.constant 0 : index
    %c0_32 = arith.constant 0 : index
    %c0_33 = arith.constant 0 : index
    %85 = vector.load %arg6[%c0_31, %c0_32, %c0_33] : memref<1x32x96xbf16, #tpu.memory_space<vmem>>, vector<1x32x96xbf16>
    %86 = vector.shape_cast %85 : vector<1x32x96xbf16> to vector<32x96xbf16>
    %cst_34 = arith.constant dense<0.000000e+00> : vector<8x96xf32>
    %87 = tpu.matmul %84, %86, %cst_34 {dimension_numbers = #tpu.dot_dimension_numbers<[1], [0], [0], [1], [0, 0, 1, 1], [], []>} : vector<8x32xbf16>, vector<32x96xbf16>, vector<8x96xf32> -> vector<8x96xf32>
    %88 = arith.truncf %87 : vector<8x96xf32> to vector<8x96xbf16>
    %89 = vector.extract_strided_slice %88 {offsets = [0, 0], sizes = [8, 8], strides = [1, 1]} : vector<8x96xbf16> to vector<8x8xbf16>
    %90 = vector.extract_strided_slice %88 {offsets = [0, 8], sizes = [8, 8], strides = [1, 1]} : vector<8x96xbf16> to vector<8x8xbf16>
    %91 = vector.extract_strided_slice %88 {offsets = [0, 16], sizes = [8, 8], strides = [1, 1]} : vector<8x96xbf16> to vector<8x8xbf16>
    %92 = vector.extract_strided_slice %88 {offsets = [0, 24], sizes = [8, 8], strides = [1, 1]} : vector<8x96xbf16> to vector<8x8xbf16>
    %93 = vector.shape_cast %89 : vector<8x8xbf16> to vector<1x8x8xbf16>
    %94 = vector.shape_cast %90 : vector<8x8xbf16> to vector<1x8x8xbf16>
    %95 = vector.shape_cast %91 : vector<8x8xbf16> to vector<1x8x8xbf16>
    %96 = vector.shape_cast %92 : vector<8x8xbf16> to vector<1x8x8xbf16>
    %97 = tpu.concatenate %93, %94, %95, %96 in 0 : vector<1x8x8xbf16>, vector<1x8x8xbf16>, vector<1x8x8xbf16>, vector<1x8x8xbf16> -> vector<4x8x8xbf16>
    %98 = vector.extract_strided_slice %88 {offsets = [0, 32], sizes = [8, 8], strides = [1, 1]} : vector<8x96xbf16> to vector<8x8xbf16>
    %99 = vector.extract_strided_slice %88 {offsets = [0, 40], sizes = [8, 8], strides = [1, 1]} : vector<8x96xbf16> to vector<8x8xbf16>
    %100 = vector.extract_strided_slice %88 {offsets = [0, 48], sizes = [8, 8], strides = [1, 1]} : vector<8x96xbf16> to vector<8x8xbf16>
    %101 = vector.extract_strided_slice %88 {offsets = [0, 56], sizes = [8, 8], strides = [1, 1]} : vector<8x96xbf16> to vector<8x8xbf16>
    %102 = vector.shape_cast %98 : vector<8x8xbf16> to vector<1x8x8xbf16>
    %103 = vector.shape_cast %99 : vector<8x8xbf16> to vector<1x8x8xbf16>
    %104 = vector.shape_cast %100 : vector<8x8xbf16> to vector<1x8x8xbf16>
    %105 = vector.shape_cast %101 : vector<8x8xbf16> to vector<1x8x8xbf16>
    %106 = tpu.concatenate %102, %103, %104, %105 in 0 : vector<1x8x8xbf16>, vector<1x8x8xbf16>, vector<1x8x8xbf16>, vector<1x8x8xbf16> -> vector<4x8x8xbf16>
    %107 = vector.extract_strided_slice %88 {offsets = [0, 64], sizes = [8, 8], strides = [1, 1]} : vector<8x96xbf16> to vector<8x8xbf16>
    %108 = vector.extract_strided_slice %88 {offsets = [0, 72], sizes = [8, 8], strides = [1, 1]} : vector<8x96xbf16> to vector<8x8xbf16>
    %109 = vector.extract_strided_slice %88 {offsets = [0, 80], sizes = [8, 8], strides = [1, 1]} : vector<8x96xbf16> to vector<8x8xbf16>
    %110 = vector.extract_strided_slice %88 {offsets = [0, 88], sizes = [8, 8], strides = [1, 1]} : vector<8x96xbf16> to vector<8x8xbf16>
    %111 = vector.shape_cast %107 : vector<8x8xbf16> to vector<1x8x8xbf16>
    %112 = vector.shape_cast %108 : vector<8x8xbf16> to vector<1x8x8xbf16>
    %113 = vector.shape_cast %109 : vector<8x8xbf16> to vector<1x8x8xbf16>
    %114 = vector.shape_cast %110 : vector<8x8xbf16> to vector<1x8x8xbf16>
    %115 = tpu.concatenate %111, %112, %113, %114 in 0 : vector<1x8x8xbf16>, vector<1x8x8xbf16>, vector<1x8x8xbf16>, vector<1x8x8xbf16> -> vector<4x8x8xbf16>
    "tpu.trace_start"() <{level = 10 : i32, message = "hnd,hmd->hnm"}> : () -> ()
    %cst_35 = arith.constant dense<0.000000e+00> : vector<4x8x8xf32>
    %116 = tpu.matmul %97, %106, %cst_35 {dimension_numbers = #tpu.dot_dimension_numbers<[2], [2], [1], [1], [0, 0, 0, 1, 1, 1], [0], [0]>} : vector<4x8x8xbf16>, vector<4x8x8xbf16>, vector<4x8x8xf32> -> vector<4x8x8xf32>
    "tpu.trace_stop"() : () -> ()
    %cst_36 = arith.constant 0.353553385 : f32
    %117 = vector.broadcast %cst_36 : f32 to vector<4x8x8xf32>
    %118 = arith.mulf %116, %117 : vector<4x8x8xf32>
    %cst_37 = arith.constant 0.000000e+00 : f32
    %119 = vector.broadcast %cst_37 : f32 to vector<4x8x8xf32>
    %120 = arith.maximumf %118, %119 : vector<4x8x8xf32>
    %121 = arith.mulf %120, %57 : vector<4x8x8xf32>
    %cst_38 = arith.constant dense<0xFF800000> : vector<4x8xf32>
    %122 = vector.multi_reduction <maximumf>, %121, %cst_38 [2] : vector<4x8x8xf32> to vector<4x8xf32>
    %123 = vector.shape_cast %122 : vector<4x8xf32> to vector<4x8x1xf32>
    %124 = vector.broadcast %123 : vector<4x8x1xf32> to vector<4x8x8xf32>
    %125 = arith.subf %121, %124 : vector<4x8x8xf32>
    %126 = math.exp %125 : vector<4x8x8xf32>
    %cst_39 = arith.constant dense<0.000000e+00> : vector<4x8xf32>
    %127 = vector.multi_reduction <add>, %126, %cst_39 [2] : vector<4x8x8xf32> to vector<4x8xf32>
    %128 = vector.shape_cast %127 : vector<4x8xf32> to vector<4x8x1xf32>
    %129 = tpu.reciprocal %128 {approx = true} : vector<4x8x1xf32> -> vector<4x8x1xf32>
    %130 = vector.broadcast %129 : vector<4x8x1xf32> to vector<4x8x8xf32>
    %131 = arith.mulf %126, %130 : vector<4x8x8xf32>
    %132 = arith.truncf %131 : vector<4x8x8xf32> to vector<4x8x8xbf16>
    "tpu.trace_start"() <{level = 10 : i32, message = "hnm,hmd->hnd"}> : () -> ()
    %cst_40 = arith.constant dense<0.000000e+00> : vector<4x8x8xf32>
    %133 = tpu.matmul %132, %115, %cst_40 {dimension_numbers = #tpu.dot_dimension_numbers<[2], [1], [1], [2], [0, 0, 0, 1, 1, 2], [0], [0]>} : vector<4x8x8xbf16>, vector<4x8x8xbf16>, vector<4x8x8xf32> -> vector<4x8x8xf32>
    "tpu.trace_stop"() : () -> ()
    %134 = vector.extract_strided_slice %133 {offsets = [0, 0, 0], sizes = [1, 8, 8], strides = [1, 1, 1]} : vector<4x8x8xf32> to vector<1x8x8xf32>
    %135 = vector.shape_cast %134 : vector<1x8x8xf32> to vector<8x8xf32>
    %136 = arith.truncf %135 : vector<8x8xf32> to vector<8x8xbf16>
    %137 = vector.extract_strided_slice %133 {offsets = [1, 0, 0], sizes = [1, 8, 8], strides = [1, 1, 1]} : vector<4x8x8xf32> to vector<1x8x8xf32>
    %138 = vector.shape_cast %137 : vector<1x8x8xf32> to vector<8x8xf32>
    %139 = arith.truncf %138 : vector<8x8xf32> to vector<8x8xbf16>
    %140 = vector.extract_strided_slice %133 {offsets = [2, 0, 0], sizes = [1, 8, 8], strides = [1, 1, 1]} : vector<4x8x8xf32> to vector<1x8x8xf32>
    %141 = vector.shape_cast %140 : vector<1x8x8xf32> to vector<8x8xf32>
    %142 = arith.truncf %141 : vector<8x8xf32> to vector<8x8xbf16>
    %143 = vector.extract_strided_slice %133 {offsets = [3, 0, 0], sizes = [1, 8, 8], strides = [1, 1, 1]} : vector<4x8x8xf32> to vector<1x8x8xf32>
    %144 = vector.shape_cast %143 : vector<1x8x8xf32> to vector<8x8xf32>
    %145 = arith.truncf %144 : vector<8x8xf32> to vector<8x8xbf16>
    %146 = tpu.concatenate %136, %139, %142, %145 in 1 : vector<8x8xbf16>, vector<8x8xbf16>, vector<8x8xbf16>, vector<8x8xbf16> -> vector<8x32xbf16>
    %c0_41 = arith.constant 0 : index
    %c0_42 = arith.constant 0 : index
    %c0_43 = arith.constant 0 : index
    %147 = vector.load %arg7[%c0_41, %c0_42, %c0_43] : memref<1x32x32xbf16, #tpu.memory_space<vmem>>, vector<1x32x32xbf16>
    %148 = vector.shape_cast %147 : vector<1x32x32xbf16> to vector<32x32xbf16>
    %cst_44 = arith.constant dense<0.000000e+00> : vector<8x32xf32>
    %149 = tpu.matmul %146, %148, %cst_44 {dimension_numbers = #tpu.dot_dimension_numbers<[1], [0], [0], [1], [0, 0, 1, 1], [], []>} : vector<8x32xbf16>, vector<32x32xbf16>, vector<8x32xf32> -> vector<8x32xf32>
    %150 = arith.addf %4, %149 : vector<8x32xf32>
    %cst_45 = arith.constant dense<0.000000e+00> : vector<8xf32>
    %151 = vector.multi_reduction <add>, %150, %cst_45 [1] : vector<8x32xf32> to vector<8xf32>
    %152 = vector.shape_cast %151 : vector<8xf32> to vector<8x1xf32>
    %cst_46 = arith.constant 3.200000e+01 : f32
    %153 = vector.broadcast %cst_46 : f32 to vector<8x1xf32>
    %154 = arith.divf %152, %153 : vector<8x1xf32>
    %155 = vector.broadcast %154 : vector<8x1xf32> to vector<8x32xf32>
    %156 = arith.subf %150, %155 : vector<8x32xf32>
    %157 = arith.mulf %156, %156 : vector<8x32xf32>
    %cst_47 = arith.constant dense<0.000000e+00> : vector<8xf32>
    %158 = vector.multi_reduction <add>, %157, %cst_47 [1] : vector<8x32xf32> to vector<8xf32>
    %159 = vector.shape_cast %158 : vector<8xf32> to vector<8x1xf32>
    %cst_48 = arith.constant 3.200000e+01 : f32
    %160 = vector.broadcast %cst_48 : f32 to vector<8x1xf32>
    %161 = arith.divf %159, %160 : vector<8x1xf32>
    %162 = vector.broadcast %154 : vector<8x1xf32> to vector<8x32xf32>
    %163 = arith.subf %150, %162 : vector<8x32xf32>
    %cst_49 = arith.constant 9.99999974E-6 : f32
    %164 = vector.broadcast %cst_49 : f32 to vector<8x1xf32>
    %165 = arith.addf %161, %164 : vector<8x1xf32>
    %166 = math.rsqrt %165 : vector<8x1xf32>
    %167 = vector.broadcast %166 : vector<8x1xf32> to vector<8x32xf32>
    %168 = arith.mulf %163, %167 : vector<8x32xf32>
    %c0_50 = arith.constant 0 : index
    %c0_51 = arith.constant 0 : index
    %c0_52 = arith.constant 0 : index
    %169 = vector.load %arg10[%c0_50, %c0_51, %c0_52] : memref<1x1x32xf32, #tpu.memory_space<vmem>>, vector<1x1x32xf32>
    %170 = vector.shape_cast %169 : vector<1x1x32xf32> to vector<1x32xf32>
    %171 = vector.broadcast %170 : vector<1x32xf32> to vector<8x32xf32>
    %172 = arith.mulf %168, %171 : vector<8x32xf32>
    %c0_53 = arith.constant 0 : index
    %c0_54 = arith.constant 0 : index
    %c0_55 = arith.constant 0 : index
    %173 = vector.load %arg11[%c0_53, %c0_54, %c0_55] : memref<1x1x32xf32, #tpu.memory_space<vmem>>, vector<1x1x32xf32>
    %174 = vector.shape_cast %173 : vector<1x1x32xf32> to vector<1x32xf32>
    %175 = vector.broadcast %174 : vector<1x32xf32> to vector<8x32xf32>
    %176 = arith.addf %172, %175 : vector<8x32xf32>
    %177 = arith.truncf %176 : vector<8x32xf32> to vector<8x32xbf16>
    %c0_56 = arith.constant 0 : index
    %c0_57 = arith.constant 0 : index
    %c0_58 = arith.constant 0 : index
    %178 = vector.load %arg12[%c0_56, %c0_57, %c0_58] : memref<1x32x64xbf16, #tpu.memory_space<vmem>>, vector<1x32x64xbf16>
    %179 = vector.shape_cast %178 : vector<1x32x64xbf16> to vector<32x64xbf16>
    %cst_59 = arith.constant dense<0.000000e+00> : vector<8x64xf32>
    %180 = tpu.matmul %177, %179, %cst_59 {dimension_numbers = #tpu.dot_dimension_numbers<[1], [0], [0], [1], [0, 0, 1, 1], [], []>} : vector<8x32xbf16>, vector<32x64xbf16>, vector<8x64xf32> -> vector<8x64xf32>
    %c0_60 = arith.constant 0 : index
    %c0_61 = arith.constant 0 : index
    %c0_62 = arith.constant 0 : index
    %181 = vector.load %arg13[%c0_60, %c0_61, %c0_62] : memref<1x1x64xf32, #tpu.memory_space<vmem>>, vector<1x1x64xf32>
    %182 = vector.shape_cast %181 : vector<1x1x64xf32> to vector<1x64xf32>
    %183 = vector.broadcast %182 : vector<1x64xf32> to vector<8x64xf32>
    %184 = arith.addf %180, %183 : vector<8x64xf32>
    %cst_63 = arith.constant 5.000000e-01 : f32
    %185 = vector.broadcast %cst_63 : f32 to vector<8x64xf32>
    %186 = arith.mulf %185, %184 : vector<8x64xf32>
    %cst_64 = arith.constant 4.471500e-02 : f32
    %187 = vector.broadcast %cst_64 : f32 to vector<8x64xf32>
    %188 = arith.mulf %187, %184 : vector<8x64xf32>
    %189 = arith.mulf %188, %184 : vector<8x64xf32>
    %190 = arith.mulf %189, %184 : vector<8x64xf32>
    %191 = arith.addf %184, %190 : vector<8x64xf32>
    %cst_65 = arith.constant 0.797884583 : f32
    %192 = vector.broadcast %cst_65 : f32 to vector<8x64xf32>
    %193 = arith.mulf %192, %191 : vector<8x64xf32>
    %194 = math.tanh %193 : vector<8x64xf32>
    %cst_66 = arith.constant 1.000000e+00 : f32
    %195 = vector.broadcast %cst_66 : f32 to vector<8x64xf32>
    %196 = arith.addf %195, %194 : vector<8x64xf32>
    %197 = arith.mulf %186, %196 : vector<8x64xf32>
    %198 = arith.truncf %197 : vector<8x64xf32> to vector<8x64xbf16>
    %c0_67 = arith.constant 0 : index
    %c0_68 = arith.constant 0 : index
    %c0_69 = arith.constant 0 : index
    %199 = vector.load %arg14[%c0_67, %c0_68, %c0_69] : memref<1x64x32xbf16, #tpu.memory_space<vmem>>, vector<1x64x32xbf16>
    %200 = vector.shape_cast %199 : vector<1x64x32xbf16> to vector<64x32xbf16>
    %cst_70 = arith.constant dense<0.000000e+00> : vector<8x32xf32>
    %201 = tpu.matmul %198, %200, %cst_70 {dimension_numbers = #tpu.dot_dimension_numbers<[1], [0], [0], [1], [0, 0, 1, 1], [], []>} : vector<8x64xbf16>, vector<64x32xbf16>, vector<8x32xf32> -> vector<8x32xf32>
    %c0_71 = arith.constant 0 : index
    %c0_72 = arith.constant 0 : index
    %c0_73 = arith.constant 0 : index
    %202 = vector.load %arg15[%c0_71, %c0_72, %c0_73] : memref<1x1x32xf32, #tpu.memory_space<vmem>>, vector<1x1x32xf32>
    %203 = vector.shape_cast %202 : vector<1x1x32xf32> to vector<1x32xf32>
    %204 = vector.broadcast %203 : vector<1x32xf32> to vector<8x32xf32>
    %205 = arith.addf %201, %204 : vector<8x32xf32>
    %206 = arith.addf %150, %205 : vector<8x32xf32>
    %c0_74 = arith.constant 0 : index
    %c0_75 = arith.constant 0 : index
    %c0_76 = arith.constant 0 : index
    %207 = vector.load %arg16[%c0_74, %c0_75, %c0_76] : memref<1x8x32xf32, #tpu.memory_space<vmem>>, vector<1x8x32xf32>
    %208 = vector.shape_cast %207 : vector<1x8x32xf32> to vector<8x32xf32>
    %209 = vector.shape_cast %206 : vector<8x32xf32> to vector<1x8x32xf32>
    tpu.vector_store %arg16[%c0_74, %c0_75, %c0_76], %209 {strides = array<i32>} : memref<1x8x32xf32, #tpu.memory_space<vmem>>, vector<1x8x32xf32>,
    return
  }
  func.func @transform_0(%arg0: i32, %arg1: i32) -> (i32, i32, i32) {
    %c0_i32 = arith.constant 0 : i32
    %c0_i32_0 = arith.constant 0 : i32
    %c0_i32_1 = arith.constant 0 : i32
    return %arg0, %c0_i32, %c0_i32_0 : i32, i32, i32
  }
  func.func @transform_1(%arg0: i32, %arg1: i32) -> (i32, i32, i32) {
    %c0_i32 = arith.constant 0 : i32
    %c0_i32_0 = arith.constant 0 : i32
    %c0_i32_1 = arith.constant 0 : i32
    return %arg0, %c0_i32, %c0_i32_0 : i32, i32, i32
  }
  func.func @transform_2(%arg0: i32, %arg1: i32) -> (i32, i32, i32) {
    %c0_i32 = arith.constant 0 : i32
    %c0_i32_0 = arith.constant 0 : i32
    %c0_i32_1 = arith.constant 0 : i32
    return %arg1, %c0_i32, %c0_i32_0 : i32, i32, i32
  }
  func.func @transform_3(%arg0: i32, %arg1: i32) -> (i32, i32, i32) {
    %c0_i32 = arith.constant 0 : i32
    %c0_i32_0 = arith.constant 0 : i32
    %c0_i32_1 = arith.constant 0 : i32
    return %arg1, %c0_i32, %c0_i32_0 : i32, i32, i32
  }
  func.func @transform_4(%arg0: i32, %arg1: i32) -> (i32, i32, i32) {
    %c0_i32 = arith.constant 0 : i32
    %c0_i32_0 = arith.constant 0 : i32
    %c0_i32_1 = arith.constant 0 : i32
    return %arg1, %c0_i32, %c0_i32_0 : i32, i32, i32
  }
  func.func @transform_5(%arg0: i32, %arg1: i32) -> (i32, i32, i32) {
    %c0_i32 = arith.constant 0 : i32
    %c0_i32_0 = arith.constant 0 : i32
    %c0_i32_1 = arith.constant 0 : i32
    return %arg1, %c0_i32, %c0_i32_0 : i32, i32, i32
  }
  func.func @transform_6(%arg0: i32, %arg1: i32) -> (i32, i32, i32, i32) {
    %c0_i32 = arith.constant 0 : i32
    %c0_i32_0 = arith.constant 0 : i32
    %c0_i32_1 = arith.constant 0 : i32
    %c0_i32_2 = arith.constant 0 : i32
    return %arg1, %c0_i32, %c0_i32_0, %c0_i32_1 : i32, i32, i32, i32
  }
  func.func @transform_7(%arg0: i32, %arg1: i32) -> (i32, i32, i32, i32) {
    %c0_i32 = arith.constant 0 : i32
    %c0_i32_0 = arith.constant 0 : i32
    %c0_i32_1 = arith.constant 0 : i32
    %c0_i32_2 = arith.constant 0 : i32
    return %arg1, %c0_i32, %c0_i32_0, %c0_i32_1 : i32, i32, i32, i32
  }
  func.func @transform_8(%arg0: i32, %arg1: i32) -> (i32, i32, i32) {
    %c0_i32 = arith.constant 0 : i32
    %c0_i32_0 = arith.constant 0 : i32
    %c0_i32_1 = arith.constant 0 : i32
    return %arg1, %c0_i32, %c0_i32_0 : i32, i32, i32
  }
  func.func @transform_9(%arg0: i32, %arg1: i32) -> (i32, i32, i32) {
    %c0_i32 = arith.constant 0 : i32
    %c0_i32_0 = arith.constant 0 : i32
    %c0_i32_1 = arith.constant 0 : i32
    return %arg1, %c0_i32, %c0_i32_0 : i32, i32, i32
  }
  func.func @transform_10(%arg0: i32, %arg1: i32) -> (i32, i32, i32) {
    %c0_i32 = arith.constant 0 : i32
    %c0_i32_0 = arith.constant 0 : i32
    %c0_i32_1 = arith.constant 0 : i32
    return %arg1, %c0_i32, %c0_i32_0 : i32, i32, i32
  }
  func.func @transform_11(%arg0: i32, %arg1: i32) -> (i32, i32, i32) {
    %c0_i32 = arith.constant 0 : i32
    %c0_i32_0 = arith.constant 0 : i32
    %c0_i32_1 = arith.constant 0 : i32
    return %arg1, %c0_i32, %c0_i32_0 : i32, i32, i32
  }
  func.func @transform_12(%arg0: i32, %arg1: i32) -> (i32, i32, i32) {
    %c0_i32 = arith.constant 0 : i32
    %c0_i32_0 = arith.constant 0 : i32
    %c0_i32_1 = arith.constant 0 : i32
    return %arg1, %c0_i32, %c0_i32_0 : i32, i32, i32
  }
  func.func @transform_13(%arg0: i32, %arg1: i32) -> (i32, i32, i32) {
    %c0_i32 = arith.constant 0 : i32
    %c0_i32_0 = arith.constant 0 : i32
    %c0_i32_1 = arith.constant 0 : i32
    return %arg1, %c0_i32, %c0_i32_0 : i32, i32, i32
  }
  func.func @transform_14(%arg0: i32, %arg1: i32) -> (i32, i32, i32) {
    %c0_i32 = arith.constant 0 : i32
    %c0_i32_0 = arith.constant 0 : i32
    %c0_i32_1 = arith.constant 0 : i32
    return %arg0, %c0_i32, %c0_i32_0 : i32, i32, i32
  }
}

</mosaic_0001>

<llo_original>
// kernel: tpu_custom_call.1
$region0: #{tpu_custom_call.1}
  #allocation0 [shape = 'u32[]', space=smem, size = 0x4, offset = 0x4, fixed_abs, tag = 'smem constant byte address 0x4 - core index']
  #allocation1 [shape = 'u32[144,128]{1,0:T(1,128)}', space=vmem, size = 0x12000, scoped, tag = 'internal scratch']
  %s0 = inlined_call_operand.hbm [shape: f32[2,8,32], index: 0, kind: input, shape index: {}]
  %s1 = inlined_call_operand.vmem [shape: f32[2,4,4], index: 1, kind: input, shape index: {}]
  %s2 = inlined_call_operand.hbm [shape: f32[2,1,32], index: 2, kind: input, shape index: {}]
  %s3 = inlined_call_operand.hbm [shape: f32[2,1,32], index: 3, kind: input, shape index: {}]
  %s4 = inlined_call_operand.vmem [shape: bf16[2,32,96], index: 4, kind: input, shape index: {}]
  %s5 = inlined_call_operand.vmem [shape: bf16[2,32,32], index: 5, kind: input, shape index: {}]
  %s6 = inlined_call_operand.vmem [shape: f32[2,4,1,1], index: 6, kind: input, shape index: {}]
  %s7 = inlined_call_operand.vmem [shape: f32[2,4,1,1], index: 7, kind: input, shape index: {}]
  %s8 = inlined_call_operand.hbm [shape: f32[2,1,32], index: 8, kind: input, shape index: {}]
  %s9 = inlined_call_operand.hbm [shape: f32[2,1,32], index: 9, kind: input, shape index: {}]
  %s10 = inlined_call_operand.vmem [shape: bf16[2,32,64], index: 10, kind: input, shape index: {}]
  %s11 = inlined_call_operand.hbm [shape: f32[2,1,64], index: 11, kind: input, shape index: {}]
  %s12 = inlined_call_operand.vmem [shape: bf16[2,64,32], index: 12, kind: input, shape index: {}]
  %s13 = inlined_call_operand.vmem [shape: f32[2,1,32], index: 13, kind: input, shape index: {}]
  %s14 = inlined_call_operand.hbm [shape: f32[2,8,32], index: 14, kind: output, shape index: {}]
  %s15 = sld [smem:[#allocation0]]
  $region117: #{tpu_custom_call.1} parent=0
    _
  %s17 = ssub.s32 1, %s15
  %s18 = scalar_select 0, %s17, %s15
  $region1: #{tpu_custom_call.1} parent=0
    #allocation2 [shape = 'u8[8192]{0}', space=vmem, size = 0x2000, scoped, tag = 'input window, operand 0']
    #allocation3 [shape = 's32[2]{0}', space=sflag, size = 0x8, scoped, tag = 'scoped memory for tpu_custom_call.1']
    #allocation4 [shape = 's32[2]{0}', space=sflag, size = 0x8, scoped, tag = 'scoped memory for tpu_custom_call.1']
    #allocation5 [shape = 'u8[1024]{0}', space=vmem, size = 0x400, scoped, tag = 'input window, operand 2']
    #allocation6 [shape = 's32[2]{0}', space=sflag, size = 0x8, scoped, tag = 'scoped memory for tpu_custom_call.1']
    #allocation7 [shape = 'u8[1024]{0}', space=vmem, size = 0x400, scoped, tag = 'input window, operand 3']
    #allocation8 [shape = 'u8[1024]{0}', space=vmem, size = 0x400, scoped, tag = 'input window, operand 8']
    #allocation9 [shape = 's32[2]{0}', space=sflag, size = 0x8, scoped, tag = 'scoped memory for tpu_custom_call.1']
    #allocation10 [shape = 'u8[1024]{0}', space=vmem, size = 0x400, scoped, tag = 'input window, operand 9']
    #allocation11 [shape = 'u8[1024]{0}', space=vmem, size = 0x400, scoped, tag = 'input window, operand 11']
    #allocation12 [shape = 's32[2]{0}', space=sflag, size = 0x8, scoped, tag = 'scoped memory for tpu_custom_call.1']
    #allocation13 [shape = 'u8[8192]{0}', space=vmem, size = 0x2000, scoped, tag = 'output window, operand 0']
    %19 = vsyncpa [#allocation3], 0
    %s20 = scalar_lea.sflag [#allocation3], 1
    %21 = vsyncpa %s20, 0
    %22 = vsyncpa [#allocation6], 0
    %s23 = scalar_lea.sflag [#allocation6], 1
    %24 = vsyncpa %s23, 0
    %25 = vsyncpa [#allocation9], 0
    %s26 = scalar_lea.sflag [#allocation9], 1
    %27 = vsyncpa %s26, 0
    %28 = vsyncpa [#allocation12], 0
    %s29 = scalar_lea.sflag [#allocation12], 1
    %30 = vsyncpa %s29, 0
    %31 = vsyncpa [#allocation4], 0
    %s32 = scalar_lea.sflag [#allocation4], 1
    %33 = vsyncpa %s32, 0
    loop: start=0, step=1, limit=6
    $region2: #{tpu_custom_call.1} parent=1 // loop_pre_header
      _
    $region3: #{tpu_custom_call.1} parent=1 // loop_header
      %s35 = sphi 0, %s39
      %p36 = scmp.ge.s32.totalorder %s35, 6
      %s42 = sphi 0, %s54
      %s43 = sphi 0, %s50
      %s44 = sphi 0, %s42
      %s45 = sphi 0, %s43
      %s46 = sphi 0, %s44
      %s47 = sphi 0, %s45
      %s57 = sphi 0, %s59
      %s60 = sphi 0, %s57
      %s61 = sphi 0, %s60
      %s77 = sphi 0, %s61
      %s83 = sphi 0, %s85
      %s86 = sphi 0, %s83
      %s87 = sphi 0, %s86
      %s103 = sphi 0, %s87
      %s109 = sphi 0, %s111
      %s112 = sphi 0, %s109
      %s113 = sphi 0, %s112
      %s129 = sphi 0, %s113
      %s135 = sphi 0, %s137
      %s138 = sphi 0, %s135
      %s139 = sphi 0, %s138
      %s155 = sphi 0, %s139
      %s161 = sphi 0, %s163
      %s164 = sphi 0, %s161
      %s165 = sphi 0, %s164
      %s181 = sphi 0, %s165
      %s187 = sphi 0, %s189
      %s190 = sphi 0, %s187
      %s191 = sphi 0, %s190
      %s207 = sphi 0, %s191
      %s213 = sphi 0, %s215
      %s216 = sphi 0, %s213
      %s217 = sphi 0, %s216
      %s233 = sphi 0, %s217
      %s239 = sphi 0, %s241
      %s242 = sphi 0, %s239
      %s243 = sphi 0, %s242
      %s259 = sphi 0, %s243
      %s265 = sphi 0, %s267
      %s268 = sphi 0, %s265
      %s269 = sphi 0, %s268
      %s285 = sphi 0, %s269
      %s291 = sphi 0, %s293
      %s294 = sphi 0, %s291
      %s295 = sphi 0, %s294
      %s311 = sphi 0, %s295
      %s317 = sphi 0, %s319
      %s320 = sphi 0, %s317
      %s321 = sphi 0, %s320
      %s337 = sphi 0, %s321
      %s343 = sphi 0, %s345
      %s346 = sphi 0, %s343
      %s347 = sphi 0, %s346
      %s363 = sphi 0, %s347
      %s369 = sphi 0, %s371
      %s372 = sphi 0, %s369
      %s373 = sphi 0, %s372
      %s389 = sphi 0, %s373
      %s395 = sphi 0, %s397
      %s398 = sphi 0, %s395
      %s399 = sphi 0, %s398
      %s415 = sphi 0, %s399
      %s421 = sphi 0, %s423
      %s424 = sphi 0, %s421
      %s425 = sphi 0, %s424
      %s441 = sphi 0, %s425
    $region4: #{tpu_custom_call.1} parent=1 // loop_header_branch
      %38 = sbr.rel (%p36) target = $region8
    $region5: #{tpu_custom_call.1} parent=1 // loop_body
      %s40 = ssub.s32 %s35, 1
      %s41 = ssub.s32 %s35, 2
      %s48 = sadd.s32 1, %s43
      %p49 = scmp.ge.s32.totalorder %s48, 2
      %s50 = scalar_select %p49, 0, %s48
      %s51 = sadd.s32 1, %s42
      %s52 = scalar_select %p49, %s51, %s42
      %p53 = scmp.ge.s32.totalorder %s52, 2
      %s54 = scalar_select %p53, 0, %s52
      %s55 = ssub.s32 %s42, %s54
      %p56 = scmp.eq.s32.totalorder %s55, 0
      %s58 = sadd.s32 %s57, 1
      %s59 = scalar_select %p56, %s57, %s58
      %p62 = pneg %p56
      %p63 = scmp.eq.s32.totalorder %s35, 3
      %p64 = por %p62, %p63
      %p65 = scmp.ne.s32.totalorder %s57, %s60
      %p66 = scmp.eq.s32.totalorder %s35, 0
      %p67 = por %p65, %p66
      %p68 = scmp.ne.s32.totalorder %s57, %s60
      %p69 = scmp.eq.s32.totalorder %s40, 3
      %p70 = por %p68, %p69
      %p71 = scmp.ne.s32.totalorder %s60, %s61
      %p72 = scmp.eq.s32.totalorder %s40, 0
      %p73 = por %p71, %p72
      %p74 = scmp.ne.s32.totalorder %s60, %s61
      %p75 = scmp.eq.s32.totalorder %s41, 3
      %p76 = por %p74, %p75
      %p78 = scmp.ne.s32.totalorder %s61, %s77
      %p79 = scmp.eq.s32.totalorder %s41, 0
      %p80 = por %p78, %p79
      %s81 = ssub.s32 %s42, %s54
      %p82 = scmp.eq.s32.totalorder %s81, 0
      %s84 = sadd.s32 %s83, 1
      %s85 = scalar_select %p82, %s83, %s84
      %p88 = pneg %p82
      %p89 = scmp.eq.s32.totalorder %s35, 3
      %p90 = por %p88, %p89
      %p91 = scmp.ne.s32.totalorder %s83, %s86
      %p92 = scmp.eq.s32.totalorder %s35, 0
      %p93 = por %p91, %p92
      %p94 = scmp.ne.s32.totalorder %s83, %s86
      %p95 = scmp.eq.s32.totalorder %s40, 3
      %p96 = por %p94, %p95
      %p97 = scmp.ne.s32.totalorder %s86, %s87
      %p98 = scmp.eq.s32.totalorder %s40, 0
      %p99 = por %p97, %p98
      %p100 = scmp.ne.s32.totalorder %s86, %s87
      %p101 = scmp.eq.s32.totalorder %s41, 3
      %p102 = por %p100, %p101
      %p104 = scmp.ne.s32.totalorder %s87, %s103
      %p105 = scmp.eq.s32.totalorder %s41, 0
      %p106 = por %p104, %p105
      %s107 = ssub.s32 %s43, %s50
      %p108 = scmp.eq.s32.totalorder %s107, 0
      %s110 = sadd.s32 %s109, 1
      %s111 = scalar_select %p108, %s109, %s110
      %p114 = pneg %p108
      %p115 = scmp.eq.s32.totalorder %s35, 3
      %p116 = por %p114, %p115
      %p117 = scmp.ne.s32.totalorder %s109, %s112
      %p118 = scmp.eq.s32.totalorder %s35, 0
      %p119 = por %p117, %p118
      %p120 = scmp.ne.s32.totalorder %s109, %s112
      %p121 = scmp.eq.s32.totalorder %s40, 3
      %p122 = por %p120, %p121
      %p123 = scmp.ne.s32.totalorder %s112, %s113
      %p124 = scmp.eq.s32.totalorder %s40, 0
      %p125 = por %p123, %p124
      %p126 = scmp.ne.s32.totalorder %s112, %s113
      %p127 = scmp.eq.s32.totalorder %s41, 3
      %p128 = por %p126, %p127
      %p130 = scmp.ne.s32.totalorder %s113, %s129
      %p131 = scmp.eq.s32.totalorder %s41, 0
      %p132 = por %p130, %p131
      %s133 = ssub.s32 %s43, %s50
      %p134 = scmp.eq.s32.totalorder %s133, 0
      %s136 = sadd.s32 %s135, 1
      %s137 = scalar_select %p134, %s135, %s136
      %p140 = pneg %p134
      %p141 = scmp.eq.s32.totalorder %s35, 3
      %p142 = por %p140, %p141
      %p143 = scmp.ne.s32.totalorder %s135, %s138
      %p144 = scmp.eq.s32.totalorder %s35, 0
      %p145 = por %p143, %p144
      %p146 = scmp.ne.s32.totalorder %s135, %s138
      %p147 = scmp.eq.s32.totalorder %s40, 3
      %p148 = por %p146, %p147
      %p149 = scmp.ne.s32.totalorder %s138, %s139
      %p150 = scmp.eq.s32.totalorder %s40, 0
      %p151 = por %p149, %p150
      %p152 = scmp.ne.s32.totalorder %s138, %s139
      %p153 = scmp.eq.s32.totalorder %s41, 3
      %p154 = por %p152, %p153
      %p156 = scmp.ne.s32.totalorder %s139, %s155
      %p157 = scmp.eq.s32.totalorder %s41, 0
      %p158 = por %p156, %p157
      %s159 = ssub.s32 %s43, %s50
      %p160 = scmp.eq.s32.totalorder %s159, 0
      %s162 = sadd.s32 %s161, 1
      %s163 = scalar_select %p160, %s161, %s162
      %p166 = pneg %p160
      %p167 = scmp.eq.s32.totalorder %s35, 3
      %p168 = por %p166, %p167
      %p169 = scmp.ne.s32.totalorder %s161, %s164
      %p170 = scmp.eq.s32.totalorder %s35, 0
      %p171 = por %p169, %p170
      %p172 = scmp.ne.s32.totalorder %s161, %s164
      %p173 = scmp.eq.s32.totalorder %s40, 3
      %p174 = por %p172, %p173
      %p175 = scmp.ne.s32.totalorder %s164, %s165
      %p176 = scmp.eq.s32.totalorder %s40, 0
      %p177 = por %p175, %p176
      %p178 = scmp.ne.s32.totalorder %s164, %s165
      %p179 = scmp.eq.s32.totalorder %s41, 3
      %p180 = por %p178, %p179
      %p182 = scmp.ne.s32.totalorder %s165, %s181
      %p183 = scmp.eq.s32.totalorder %s41, 0
      %p184 = por %p182, %p183
      %s185 = ssub.s32 %s43, %s50
      %p186 = scmp.eq.s32.totalorder %s185, 0
      %s188 = sadd.s32 %s187, 1
      %s189 = scalar_select %p186, %s187, %s188
      %p192 = pneg %p186
      %p193 = scmp.eq.s32.totalorder %s35, 3
      %p194 = por %p192, %p193
      %p195 = scmp.ne.s32.totalorder %s187, %s190
      %p196 = scmp.eq.s32.totalorder %s35, 0
      %p197 = por %p195, %p196
      %p198 = scmp.ne.s32.totalorder %s187, %s190
      %p199 = scmp.eq.s32.totalorder %s40, 3
      %p200 = por %p198, %p199
      %p201 = scmp.ne.s32.totalorder %s190, %s191
      %p202 = scmp.eq.s32.totalorder %s40, 0
      %p203 = por %p201, %p202
      %p204 = scmp.ne.s32.totalorder %s190, %s191
      %p205 = scmp.eq.s32.totalorder %s41, 3
      %p206 = por %p204, %p205
      %p208 = scmp.ne.s32.totalorder %s191, %s207
      %p209 = scmp.eq.s32.totalorder %s41, 0
      %p210 = por %p208, %p209
      %s211 = ssub.s32 %s43, %s50
      %p212 = scmp.eq.s32.totalorder %s211, 0
      %s214 = sadd.s32 %s213, 1
      %s215 = scalar_select %p212, %s213, %s214
      %p218 = pneg %p212
      %p219 = scmp.eq.s32.totalorder %s35, 3
      %p220 = por %p218, %p219
      %p221 = scmp.ne.s32.totalorder %s213, %s216
      %p222 = scmp.eq.s32.totalorder %s35, 0
      %p223 = por %p221, %p222
      %p224 = scmp.ne.s32.totalorder %s213, %s216
      %p225 = scmp.eq.s32.totalorder %s40, 3
      %p226 = por %p224, %p225
      %p227 = scmp.ne.s32.totalorder %s216, %s217
      %p228 = scmp.eq.s32.totalorder %s40, 0
      %p229 = por %p227, %p228
      %p230 = scmp.ne.s32.totalorder %s216, %s217
      %p231 = scmp.eq.s32.totalorder %s41, 3
      %p232 = por %p230, %p231
      %p234 = scmp.ne.s32.totalorder %s217, %s233
      %p235 = scmp.eq.s32.totalorder %s41, 0
      %p236 = por %p234, %p235
      %s237 = ssub.s32 %s43, %s50
      %p238 = scmp.eq.s32.totalorder %s237, 0
      %s240 = sadd.s32 %s239, 1
      %s241 = scalar_select %p238, %s239, %s240
      %p244 = pneg %p238
      %p245 = scmp.eq.s32.totalorder %s35, 3
      %p246 = por %p244, %p245
      %p247 = scmp.ne.s32.totalorder %s239, %s242
      %p248 = scmp.eq.s32.totalorder %s35, 0
      %p249 = por %p247, %p248
      %p250 = scmp.ne.s32.totalorder %s239, %s242
      %p251 = scmp.eq.s32.totalorder %s40, 3
      %p252 = por %p250, %p251
      %p253 = scmp.ne.s32.totalorder %s242, %s243
      %p254 = scmp.eq.s32.totalorder %s40, 0
      %p255 = por %p253, %p254
      %p256 = scmp.ne.s32.totalorder %s242, %s243
      %p257 = scmp.eq.s32.totalorder %s41, 3
      %p258 = por %p256, %p257
      %p260 = scmp.ne.s32.totalorder %s243, %s259
      %p261 = scmp.eq.s32.totalorder %s41, 0
      %p262 = por %p260, %p261
      %s263 = ssub.s32 %s43, %s50
      %p264 = scmp.eq.s32.totalorder %s263, 0
      %s266 = sadd.s32 %s265, 1
      %s267 = scalar_select %p264, %s265, %s266
      %p270 = pneg %p264
      %p271 = scmp.eq.s32.totalorder %s35, 3
      %p272 = por %p270, %p271
      %p273 = scmp.ne.s32.totalorder %s265, %s268
      %p274 = scmp.eq.s32.totalorder %s35, 0
      %p275 = por %p273, %p274
      %p276 = scmp.ne.s32.totalorder %s265, %s268
      %p277 = scmp.eq.s32.totalorder %s40, 3
      %p278 = por %p276, %p277
      %p279 = scmp.ne.s32.totalorder %s268, %s269
      %p280 = scmp.eq.s32.totalorder %s40, 0
      %p281 = por %p279, %p280
      %p282 = scmp.ne.s32.totalorder %s268, %s269
      %p283 = scmp.eq.s32.totalorder %s41, 3
      %p284 = por %p282, %p283
      %p286 = scmp.ne.s32.totalorder %s269, %s285
      %p287 = scmp.eq.s32.totalorder %s41, 0
      %p288 = por %p286, %p287
      %s289 = ssub.s32 %s43, %s50
      %p290 = scmp.eq.s32.totalorder %s289, 0
      %s292 = sadd.s32 %s291, 1
      %s293 = scalar_select %p290, %s291, %s292
      %p296 = pneg %p290
      %p297 = scmp.eq.s32.totalorder %s35, 3
      %p298 = por %p296, %p297
      %p299 = scmp.ne.s32.totalorder %s291, %s294
      %p300 = scmp.eq.s32.totalorder %s35, 0
      %p301 = por %p299, %p300
      %p302 = scmp.ne.s32.totalorder %s291, %s294
      %p303 = scmp.eq.s32.totalorder %s40, 3
      %p304 = por %p302, %p303
      %p305 = scmp.ne.s32.totalorder %s294, %s295
      %p306 = scmp.eq.s32.totalorder %s40, 0
      %p307 = por %p305, %p306
      %p308 = scmp.ne.s32.totalorder %s294, %s295
      %p309 = scmp.eq.s32.totalorder %s41, 3
      %p310 = por %p308, %p309
      %p312 = scmp.ne.s32.totalorder %s295, %s311
      %p313 = scmp.eq.s32.totalorder %s41, 0
      %p314 = por %p312, %p313
      %s315 = ssub.s32 %s43, %s50
      %p316 = scmp.eq.s32.totalorder %s315, 0
      %s318 = sadd.s32 %s317, 1
      %s319 = scalar_select %p316, %s317, %s318
      %p322 = pneg %p316
      %p323 = scmp.eq.s32.totalorder %s35, 3
      %p324 = por %p322, %p323
      %p325 = scmp.ne.s32.totalorder %s317, %s320
      %p326 = scmp.eq.s32.totalorder %s35, 0
      %p327 = por %p325, %p326
      %p328 = scmp.ne.s32.totalorder %s317, %s320
      %p329 = scmp.eq.s32.totalorder %s40, 3
      %p330 = por %p328, %p329
      %p331 = scmp.ne.s32.totalorder %s320, %s321
      %p332 = scmp.eq.s32.totalorder %s40, 0
      %p333 = por %p331, %p332
      %p334 = scmp.ne.s32.totalorder %s320, %s321
      %p335 = scmp.eq.s32.totalorder %s41, 3
      %p336 = por %p334, %p335
      %p338 = scmp.ne.s32.totalorder %s321, %s337
      %p339 = scmp.eq.s32.totalorder %s41, 0
      %p340 = por %p338, %p339
      %s341 = ssub.s32 %s43, %s50
      %p342 = scmp.eq.s32.totalorder %s341, 0
      %s344 = sadd.s32 %s343, 1
      %s345 = scalar_select %p342, %s343, %s344
      %p348 = pneg %p342
      %p349 = scmp.eq.s32.totalorder %s35, 3
      %p350 = por %p348, %p349
      %p351 = scmp.ne.s32.totalorder %s343, %s346
      %p352 = scmp.eq.s32.totalorder %s35, 0
      %p353 = por %p351, %p352
      %p354 = scmp.ne.s32.totalorder %s343, %s346
      %p355 = scmp.eq.s32.totalorder %s40, 3
      %p356 = por %p354, %p355
      %p357 = scmp.ne.s32.totalorder %s346, %s347
      %p358 = scmp.eq.s32.totalorder %s40, 0
      %p359 = por %p357, %p358
      %p360 = scmp.ne.s32.totalorder %s346, %s347
      %p361 = scmp.eq.s32.totalorder %s41, 3
      %p362 = por %p360, %p361
      %p364 = scmp.ne.s32.totalorder %s347, %s363
      %p365 = scmp.eq.s32.totalorder %s41, 0
      %p366 = por %p364, %p365
      %s367 = ssub.s32 %s43, %s50
      %p368 = scmp.eq.s32.totalorder %s367, 0
      %s370 = sadd.s32 %s369, 1
      %s371 = scalar_select %p368, %s369, %s370
      %p374 = pneg %p368
      %p375 = scmp.eq.s32.totalorder %s35, 3
      %p376 = por %p374, %p375
      %p377 = scmp.ne.s32.totalorder %s369, %s372
      %p378 = scmp.eq.s32.totalorder %s35, 0
      %p379 = por %p377, %p378
      %p380 = scmp.ne.s32.totalorder %s369, %s372
      %p381 = scmp.eq.s32.totalorder %s40, 3
      %p382 = por %p380, %p381
      %p383 = scmp.ne.s32.totalorder %s372, %s373
      %p384 = scmp.eq.s32.totalorder %s40, 0
      %p385 = por %p383, %p384
      %p386 = scmp.ne.s32.totalorder %s372, %s373
      %p387 = scmp.eq.s32.totalorder %s41, 3
      %p388 = por %p386, %p387
      %p390 = scmp.ne.s32.totalorder %s373, %s389
      %p391 = scmp.eq.s32.totalorder %s41, 0
      %p392 = por %p390, %p391
      %s393 = ssub.s32 %s43, %s50
      %p394 = scmp.eq.s32.totalorder %s393, 0
      %s396 = sadd.s32 %s395, 1
      %s397 = scalar_select %p394, %s395, %s396
      %p400 = pneg %p394
      %p401 = scmp.eq.s32.totalorder %s35, 3
      %p402 = por %p400, %p401
      %p403 = scmp.ne.s32.totalorder %s395, %s398
      %p404 = scmp.eq.s32.totalorder %s35, 0
      %p405 = por %p403, %p404
      %p406 = scmp.ne.s32.totalorder %s395, %s398
      %p407 = scmp.eq.s32.totalorder %s40, 3
      %p408 = por %p406, %p407
      %p409 = scmp.ne.s32.totalorder %s398, %s399
      %p410 = scmp.eq.s32.totalorder %s40, 0
      %p411 = por %p409, %p410
      %p412 = scmp.ne.s32.totalorder %s398, %s399
      %p413 = scmp.eq.s32.totalorder %s41, 3
      %p414 = por %p412, %p413
      %p416 = scmp.ne.s32.totalorder %s399, %s415
      %p417 = scmp.eq.s32.totalorder %s41, 0
      %p418 = por %p416, %p417
      %s419 = ssub.s32 %s42, %s54
      %p420 = scmp.eq.s32.totalorder %s419, 0
      %s422 = sadd.s32 %s421, 1
      %s423 = scalar_select %p420, %s421, %s422
      %p426 = pneg %p420
      %p427 = scmp.eq.s32.totalorder %s35, 3
      %p428 = por %p426, %p427
      %p429 = scmp.ne.s32.totalorder %s421, %s424
      %p430 = scmp.eq.s32.totalorder %s35, 0
      %p431 = por %p429, %p430
      %p432 = scmp.ne.s32.totalorder %s421, %s424
      %p433 = scmp.eq.s32.totalorder %s40, 3
      %p434 = por %p432, %p433
      %p435 = scmp.ne.s32.totalorder %s424, %s425
      %p436 = scmp.eq.s32.totalorder %s40, 0
      %p437 = por %p435, %p436
      %p438 = scmp.ne.s32.totalorder %s424, %s425
      %p439 = scmp.eq.s32.totalorder %s41, 3
      %p440 = por %p438, %p439
      %p442 = scmp.ne.s32.totalorder %s425, %s441
      %p443 = scmp.eq.s32.totalorder %s41, 0
      %p444 = por %p442, %p443
      %p445 = scmp.le.s32.totalorder 1, %s35
      %p446 = scmp.lt.s32.totalorder %s35, 5
      %p447 = pnand %p445, %p446
      %p448 = pneg %p447
      // Predicated region
      $region9: #{tpu_custom_call.1} parent=5 // pred_check
        _
      $region10: #{tpu_custom_call.1} parent=5 // pred_check_branch
        %450 = sbr.rel (%p447) target = $region12
      $region11: #{tpu_custom_call.1} parent=5 // pred_region
        %s451 = ssub.s32 %s35, 1
      $region12: #{tpu_custom_call.1} parent=5 // pred_fallthru
        _
      %p452 = scmp.lt.s32.totalorder %s35, 4
      // Predicated region
      $region13: #{tpu_custom_call.1} parent=5 // pred_check
        %p453 = pneg %p452
      $region14: #{tpu_custom_call.1} parent=5 // pred_check_branch
        %455 = sbr.rel (%p453) target = $region16
      $region15: #{tpu_custom_call.1} parent=5 // pred_region
        // Predicated region
        $region17: #{tpu_custom_call.1} parent=15 // pred_check
          %p456 = pneg %p67
        $region18: #{tpu_custom_call.1} parent=15 // pred_check_branch
          %458 = sbr.rel (%p456) target = $region20
        $region19: #{tpu_custom_call.1} parent=15 // pred_region
          %s459 = sand.u32 %s57, 1
          %s460 = scalar_lea.sflag [#allocation3], %s459
          %s461 = sand.u32 %s57, 1
          %s462 = smul.addr %s461, 8
          %s463 = scalar_lea.vmem [#allocation2], %s462
          %s465 = ssub.s32 128, 128
          %466 = vsyncadd %s460, %s465
          %s467 = smul.addr %s42, 128
          %s468 = scalar_lea.hbm %s0, %s467
          %s470 = sshll.u32 %s463, 4
          %s471 = int_to_ptr.vmem [resolvable:$true] %s470
          %473 = dma.hbm_to_vmem [thread:$0]  %s468, 128, %s471, %s460
        $region20: #{tpu_custom_call.1} parent=15 // pred_fallthru
          _
        // Predicated region
        $region21: #{tpu_custom_call.1} parent=15 // pred_check
          %p474 = pneg %p93
        $region22: #{tpu_custom_call.1} parent=15 // pred_check_branch
          %476 = sbr.rel (%p474) target = $region24
        $region23: #{tpu_custom_call.1} parent=15 // pred_region
          %p477 = scmp.lt.s32.totalorder %s42, 1
          %s478 = scalar_select %p477, %s42, 1
          %s479 = smul.addr %s478, 4
          %s480 = scalar_lea.vmem %s1, %s479
        $region24: #{tpu_custom_call.1} parent=15 // pred_fallthru
          _
        // Predicated region
        $region25: #{tpu_custom_call.1} parent=15 // pred_check
          %p481 = pneg %p119
        $region26: #{tpu_custom_call.1} parent=15 // pred_check_branch
          %483 = sbr.rel (%p481) target = $region28
        $region27: #{tpu_custom_call.1} parent=15 // pred_region
          %s484 = sand.u32 %s35, 1
          %s485 = scalar_lea.sflag [#allocation6], %s484
          %s486 = sand.u32 %s109, 1
          %s487 = scalar_lea.vmem [#allocation5], %s486
          %s489 = ssub.s32 16, 16
          %490 = vsyncadd %s485, %s489
          %s491 = smul.addr %s43, 16
          %s492 = scalar_lea.hbm %s2, %s491
          %s494 = sshll.u32 %s487, 4
          %s495 = int_to_ptr.vmem [resolvable:$true] %s494
          %497 = dma.hbm_to_vmem [thread:$0]  %s492, 16, %s495, %s485
        $region28: #{tpu_custom_call.1} parent=15 // pred_fallthru
          _
        // Predicated region
        $region29: #{tpu_custom_call.1} parent=15 // pred_check
          %p498 = pneg %p145
        $region30: #{tpu_custom_call.1} parent=15 // pred_check_branch
          %500 = sbr.rel (%p498) target = $region32
        $region31: #{tpu_custom_call.1} parent=15 // pred_region
          %s501 = sand.u32 %s35, 1
          %s502 = scalar_lea.sflag [#allocation6], %s501
          %s503 = sand.u32 %s135, 1
          %s504 = scalar_lea.vmem [#allocation7], %s503
          %s506 = ssub.s32 16, 16
          %507 = vsyncadd %s502, %s506
          %s508 = smul.addr %s43, 16
          %s509 = scalar_lea.hbm %s3, %s508
          %s511 = sshll.u32 %s504, 4
          %s512 = int_to_ptr.vmem [resolvable:$true] %s511
          %514 = dma.hbm_to_vmem [thread:$0]  %s509, 16, %s512, %s502
        $region32: #{tpu_custom_call.1} parent=15 // pred_fallthru
          _
        // Predicated region
        $region33: #{tpu_custom_call.1} parent=15 // pred_check
          %p515 = pneg %p171
        $region34: #{tpu_custom_call.1} parent=15 // pred_check_branch
          %517 = sbr.rel (%p515) target = $region36
        $region35: #{tpu_custom_call.1} parent=15 // pred_region
          %p518 = scmp.lt.s32.totalorder %s43, 1
          %s519 = scalar_select %p518, %s43, 1
          %s520 = smul.addr %s519, 4
          %s521 = smul.addr %s520, 4
          %s522 = scalar_lea.vmem %s4, %s521
        $region36: #{tpu_custom_call.1} parent=15 // pred_fallthru
          _
        // Predicated region
        $region37: #{tpu_custom_call.1} parent=15 // pred_check
          %p523 = pneg %p197
        $region38: #{tpu_custom_call.1} parent=15 // pred_check_branch
          %525 = sbr.rel (%p523) target = $region40
        $region39: #{tpu_custom_call.1} parent=15 // pred_region
          %p526 = scmp.lt.s32.totalorder %s43, 1
          %s527 = scalar_select %p526, %s43, 1
          %s528 = smul.addr %s527, 4
          %s529 = smul.addr %s528, 4
          %s530 = scalar_lea.vmem %s5, %s529
        $region40: #{tpu_custom_call.1} parent=15 // pred_fallthru
          _
        // Predicated region
        $region41: #{tpu_custom_call.1} parent=15 // pred_check
          %p531 = pneg %p223
        $region42: #{tpu_custom_call.1} parent=15 // pred_check_branch
          %533 = sbr.rel (%p531) target = $region44
        $region43: #{tpu_custom_call.1} parent=15 // pred_region
          %p534 = scmp.lt.s32.totalorder %s43, 1
          %s535 = scalar_select %p534, %s43, 1
          %s536 = smul.addr %s535, 4
          %s537 = scalar_lea.vmem %s6, %s536
        $region44: #{tpu_custom_call.1} parent=15 // pred_fallthru
          _
        // Predicated region
        $region45: #{tpu_custom_call.1} parent=15 // pred_check
          %p538 = pneg %p249
        $region46: #{tpu_custom_call.1} parent=15 // pred_check_branch
          %540 = sbr.rel (%p538) target = $region48
        $region47: #{tpu_custom_call.1} parent=15 // pred_region
          %p541 = scmp.lt.s32.totalorder %s43, 1
          %s542 = scalar_select %p541, %s43, 1
          %s543 = smul.addr %s542, 4
          %s544 = scalar_lea.vmem %s7, %s543
        $region48: #{tpu_custom_call.1} parent=15 // pred_fallthru
          _
        // Predicated region
        $region49: #{tpu_custom_call.1} parent=15 // pred_check
          %p545 = pneg %p275
        $region50: #{tpu_custom_call.1} parent=15 // pred_check_branch
          %547 = sbr.rel (%p545) target = $region52
        $region51: #{tpu_custom_call.1} parent=15 // pred_region
          %s548 = sand.u32 %s35, 1
          %s549 = scalar_lea.sflag [#allocation9], %s548
          %s550 = sand.u32 %s265, 1
          %s551 = scalar_lea.vmem [#allocation8], %s550
          %s553 = ssub.s32 16, 16
          %554 = vsyncadd %s549, %s553
          %s555 = smul.addr %s43, 16
          %s556 = scalar_lea.hbm %s8, %s555
          %s558 = sshll.u32 %s551, 4
          %s559 = int_to_ptr.vmem [resolvable:$true] %s558
          %561 = dma.hbm_to_vmem [thread:$0]  %s556, 16, %s559, %s549
        $region52: #{tpu_custom_call.1} parent=15 // pred_fallthru
          _
        // Predicated region
        $region53: #{tpu_custom_call.1} parent=15 // pred_check
          %p562 = pneg %p301
        $region54: #{tpu_custom_call.1} parent=15 // pred_check_branch
          %564 = sbr.rel (%p562) target = $region56
        $region55: #{tpu_custom_call.1} parent=15 // pred_region
          %s565 = sand.u32 %s35, 1
          %s566 = scalar_lea.sflag [#allocation9], %s565
          %s567 = sand.u32 %s291, 1
          %s568 = scalar_lea.vmem [#allocation10], %s567
          %s570 = ssub.s32 16, 16
          %571 = vsyncadd %s566, %s570
          %s572 = smul.addr %s43, 16
          %s573 = scalar_lea.hbm %s9, %s572
          %s575 = sshll.u32 %s568, 4
          %s576 = int_to_ptr.vmem [resolvable:$true] %s575
          %578 = dma.hbm_to_vmem [thread:$0]  %s573, 16, %s576, %s566
        $region56: #{tpu_custom_call.1} parent=15 // pred_fallthru
          _
        // Predicated region
        $region57: #{tpu_custom_call.1} parent=15 // pred_check
          %p579 = pneg %p327
        $region58: #{tpu_custom_call.1} parent=15 // pred_check_branch
          %581 = sbr.rel (%p579) target = $region60
        $region59: #{tpu_custom_call.1} parent=15 // pred_region
          %p582 = scmp.lt.s32.totalorder %s43, 1
          %s583 = scalar_select %p582, %s43, 1
          %s584 = smul.addr %s583, 4
          %s585 = smul.addr %s584, 4
          %s586 = scalar_lea.vmem %s10, %s585
        $region60: #{tpu_custom_call.1} parent=15 // pred_fallthru
          _
        // Predicated region
        $region61: #{tpu_custom_call.1} parent=15 // pred_check
          %p587 = pneg %p353
        $region62: #{tpu_custom_call.1} parent=15 // pred_check_branch
          %589 = sbr.rel (%p587) target = $region64
        $region63: #{tpu_custom_call.1} parent=15 // pred_region
          %s590 = sand.u32 %s343, 1
          %s591 = scalar_lea.sflag [#allocation12], %s590
          %s592 = sand.u32 %s343, 1
          %s593 = scalar_lea.vmem [#allocation11], %s592
          %s595 = ssub.s32 16, 16
          %596 = vsyncadd %s591, %s595
          %s597 = smul.addr %s43, 16
          %s598 = scalar_lea.hbm %s11, %s597
          %s600 = sshll.u32 %s593, 4
          %s601 = int_to_ptr.vmem [resolvable:$true] %s600
          %603 = dma.hbm_to_vmem [thread:$0]  %s598, 16, %s601, %s591
        $region64: #{tpu_custom_call.1} parent=15 // pred_fallthru
          _
        // Predicated region
        $region65: #{tpu_custom_call.1} parent=15 // pred_check
          %p604 = pneg %p379
        $region66: #{tpu_custom_call.1} parent=15 // pred_check_branch
          %606 = sbr.rel (%p604) target = $region68
        $region67: #{tpu_custom_call.1} parent=15 // pred_region
          %p607 = scmp.lt.s32.totalorder %s43, 1
          %s608 = scalar_select %p607, %s43, 1
          %s609 = smul.addr %s608, 8
          %s610 = smul.addr %s609, 4
          %s611 = scalar_lea.vmem %s12, %s610
        $region68: #{tpu_custom_call.1} parent=15 // pred_fallthru
          _
        // Predicated region
        $region69: #{tpu_custom_call.1} parent=15 // pred_check
          %p612 = pneg %p405
        $region70: #{tpu_custom_call.1} parent=15 // pred_check_branch
          %614 = sbr.rel (%p612) target = $region72
        $region71: #{tpu_custom_call.1} parent=15 // pred_region
          %p615 = scmp.lt.s32.totalorder %s43, 1
          %s616 = scalar_select %p615, %s43, 1
          %s617 = scalar_lea.vmem %s13, %s616
        $region72: #{tpu_custom_call.1} parent=15 // pred_fallthru
          _
      $region16: #{tpu_custom_call.1} parent=5 // pred_fallthru
        _
      %p618 = scmp.le.s32.totalorder 1, %s35
      %p619 = scmp.lt.s32.totalorder %s35, 5
      %p620 = pnand %p618, %p619
      %p621 = pneg %p620
      // Predicated region
      $region73: #{tpu_custom_call.1} parent=5 // pred_check
        _
      $region74: #{tpu_custom_call.1} parent=5 // pred_check_branch
        %623 = sbr.rel (%p620) target = $region76
      $region75: #{tpu_custom_call.1} parent=5 // pred_region
        %s624 = ssub.s32 %s35, 1
        %s625 = sand.u32 %s60, 1
        %s626 = scalar_lea.sflag [#allocation3], %s625
        %s627 = sand.u32 %s60, 1
        %s628 = smul.addr %s627, 8
        %s629 = scalar_lea.vmem [#allocation2], %s628
        // Predicated region
        $region77: #{tpu_custom_call.1} parent=75 // pred_check
          %p630 = pneg %p73
        $region78: #{tpu_custom_call.1} parent=75 // pred_check_branch
          %632 = sbr.rel (%p630) target = $region80
        $region79: #{tpu_custom_call.1} parent=75 // pred_region
          %633 = dma.done %s626, 128
        $region80: #{tpu_custom_call.1} parent=75 // pred_fallthru
          _
        %s634 = sand.u32 %s40, 1
        %s635 = scalar_lea.sflag [#allocation6], %s634
        %s636 = sand.u32 %s112, 1
        %s637 = scalar_lea.vmem [#allocation5], %s636
        // Predicated region
        $region81: #{tpu_custom_call.1} parent=75 // pred_check
          %p638 = pneg %p125
        $region82: #{tpu_custom_call.1} parent=75 // pred_check_branch
          %640 = sbr.rel (%p638) target = $region84
        $region83: #{tpu_custom_call.1} parent=75 // pred_region
          %641 = dma.done %s635, 16
        $region84: #{tpu_custom_call.1} parent=75 // pred_fallthru
          _
        %s642 = sand.u32 %s40, 1
        %s643 = scalar_lea.sflag [#allocation6], %s642
        %s644 = sand.u32 %s138, 1
        %s645 = scalar_lea.vmem [#allocation7], %s644
        // Predicated region
        $region85: #{tpu_custom_call.1} parent=75 // pred_check
          %p646 = pneg %p151
        $region86: #{tpu_custom_call.1} parent=75 // pred_check_branch
          %648 = sbr.rel (%p646) target = $region88
        $region87: #{tpu_custom_call.1} parent=75 // pred_region
          %649 = dma.done %s643, 16
        $region88: #{tpu_custom_call.1} parent=75 // pred_fallthru
          _
        %s650 = sand.u32 %s40, 1
        %s651 = scalar_lea.sflag [#allocation9], %s650
        %s652 = sand.u32 %s268, 1
        %s653 = scalar_lea.vmem [#allocation8], %s652
        // Predicated region
        $region89: #{tpu_custom_call.1} parent=75 // pred_check
          %p654 = pneg %p281
        $region90: #{tpu_custom_call.1} parent=75 // pred_check_branch
          %656 = sbr.rel (%p654) target = $region92
        $region91: #{tpu_custom_call.1} parent=75 // pred_region
          %657 = dma.done %s651, 16
        $region92: #{tpu_custom_call.1} parent=75 // pred_fallthru
          _
        %s658 = sand.u32 %s40, 1
        %s659 = scalar_lea.sflag [#allocation9], %s658
        %s660 = sand.u32 %s294, 1
        %s661 = scalar_lea.vmem [#allocation10], %s660
        // Predicated region
        $region93: #{tpu_custom_call.1} parent=75 // pred_check
          %p662 = pneg %p307
        $region94: #{tpu_custom_call.1} parent=75 // pred_check_branch
          %664 = sbr.rel (%p662) target = $region96
        $region95: #{tpu_custom_call.1} parent=75 // pred_region
          %665 = dma.done %s659, 16
        $region96: #{tpu_custom_call.1} parent=75 // pred_fallthru
          _
        %s666 = sand.u32 %s346, 1
        %s667 = scalar_lea.sflag [#allocation12], %s666
        %s668 = sand.u32 %s346, 1
        %s669 = scalar_lea.vmem [#allocation11], %s668
        // Predicated region
        $region97: #{tpu_custom_call.1} parent=75 // pred_check
          %p670 = pneg %p359
        $region98: #{tpu_custom_call.1} parent=75 // pred_check_branch
          %672 = sbr.rel (%p670) target = $region100
        $region99: #{tpu_custom_call.1} parent=75 // pred_region
          %673 = dma.done %s667, 16
        $region100: #{tpu_custom_call.1} parent=75 // pred_fallthru
          _
        %s674 = sand.u32 %s60, 1
        %s675 = scalar_lea.sflag [#allocation3], %s674
        %s676 = sand.u32 %s60, 1
        %s677 = smul.addr %s676, 8
        %s678 = scalar_lea.vmem [#allocation2], %s677
        %p679 = pneg %p73
        %p680 = pneg %p70
        %p681 = scmp.lt.s32.totalorder %s44, 1
        %s682 = scalar_select %p681, %s44, 1
        %s683 = smul.addr %s682, 4
        %s684 = scalar_lea.vmem %s1, %s683
        %p685 = pneg %p99
        %p686 = pneg %p96
        %s687 = sand.u32 %s40, 1
        %s688 = scalar_lea.sflag [#allocation6], %s687
        %s689 = sand.u32 %s112, 1
        %s690 = scalar_lea.vmem [#allocation5], %s689
        %p691 = pneg %p125
        %p692 = pneg %p122
        %s693 = sand.u32 %s40, 1
        %s694 = scalar_lea.sflag [#allocation6], %s693
        %s695 = sand.u32 %s138, 1
        %s696 = scalar_lea.vmem [#allocation7], %s695
        %p697 = pneg %p151
        %p698 = pneg %p148
        %p699 = scmp.lt.s32.totalorder %s45, 1
        %s700 = scalar_select %p699, %s45, 1
        %s701 = smul.addr %s700, 4
        %s702 = smul.addr %s701, 4
        %s703 = scalar_lea.vmem %s4, %s702
        %p704 = pneg %p177
        %p705 = pneg %p174
        %p706 = scmp.lt.s32.totalorder %s45, 1
        %s707 = scalar_select %p706, %s45, 1
        %s708 = smul.addr %s707, 4
        %s709 = smul.addr %s708, 4
        %s710 = scalar_lea.vmem %s5, %s709
        %p711 = pneg %p203
        %p712 = pneg %p200
        %p713 = scmp.lt.s32.totalorder %s45, 1
        %s714 = scalar_select %p713, %s45, 1
        %s715 = smul.addr %s714, 4
        %s716 = scalar_lea.vmem %s6, %s715
        %p717 = pneg %p229
        %p718 = pneg %p226
        %p719 = scmp.lt.s32.totalorder %s45, 1
        %s720 = scalar_select %p719, %s45, 1
        %s721 = smul.addr %s720, 4
        %s722 = scalar_lea.vmem %s7, %s721
        %p723 = pneg %p255
        %p724 = pneg %p252
        %s725 = sand.u32 %s40, 1
        %s726 = scalar_lea.sflag [#allocation9], %s725
        %s727 = sand.u32 %s268, 1
        %s728 = scalar_lea.vmem [#allocation8], %s727
        %p729 = pneg %p281
        %p730 = pneg %p278
        %s731 = sand.u32 %s40, 1
        %s732 = scalar_lea.sflag [#allocation9], %s731
        %s733 = sand.u32 %s294, 1
        %s734 = scalar_lea.vmem [#allocation10], %s733
        %p735 = pneg %p307
        %p736 = pneg %p304
        %p737 = scmp.lt.s32.totalorder %s45, 1
        %s738 = scalar_select %p737, %s45, 1
        %s739 = smul.addr %s738, 4
        %s740 = smul.addr %s739, 4
        %s741 = scalar_lea.vmem %s10, %s740
        %p742 = pneg %p333
        %p743 = pneg %p330
        %s744 = sand.u32 %s346, 1
        %s745 = scalar_lea.sflag [#allocation12], %s744
        %s746 = sand.u32 %s346, 1
        %s747 = scalar_lea.vmem [#allocation11], %s746
        %p748 = pneg %p359
        %p749 = pneg %p356
        %p750 = scmp.lt.s32.totalorder %s45, 1
        %s751 = scalar_select %p750, %s45, 1
        %s752 = smul.addr %s751, 8
        %s753 = smul.addr %s752, 4
        %s754 = scalar_lea.vmem %s12, %s753
        %p755 = pneg %p385
        %p756 = pneg %p382
        %p757 = scmp.lt.s32.totalorder %s45, 1
        %s758 = scalar_select %p757, %s45, 1
        %s759 = scalar_lea.vmem %s13, %s758
        %p760 = pneg %p411
        %p761 = pneg %p408
        %p762 = pneg %p437
        %p763 = pneg %p434
        %s764 = sand.u32 %s424, 1
        %s765 = scalar_lea.sflag [#allocation4], %s764
        %s766 = sand.u32 %s424, 1
        %s767 = smul.addr %s766, 8
        %s768 = scalar_lea.vmem [#allocation13], %s767
        %p769 = scmp.lt.s32.totalorder %s44, 1
        %s770 = scalar_select %p769, %s44, 1
        %s771 = smul.addr %s770, 4
        %s772 = scalar_lea.vmem %s1, %s771
        %p773 = scmp.lt.s32.totalorder %s45, 1
        %s774 = scalar_select %p773, %s45, 1
        %s775 = smul.addr %s774, 4
        %s776 = smul.addr %s775, 4
        %s777 = scalar_lea.vmem %s4, %s776
        %p778 = scmp.lt.s32.totalorder %s45, 1
        %s779 = scalar_select %p778, %s45, 1
        %s780 = smul.addr %s779, 4
        %s781 = smul.addr %s780, 4
        %s782 = scalar_lea.vmem %s5, %s781
        %p783 = scmp.lt.s32.totalorder %s45, 1
        %s784 = scalar_select %p783, %s45, 1
        %s785 = smul.addr %s784, 4
        %s786 = scalar_lea.vmem %s6, %s785
        %p787 = scmp.lt.s32.totalorder %s45, 1
        %s788 = scalar_select %p787, %s45, 1
        %s789 = smul.addr %s788, 4
        %s790 = scalar_lea.vmem %s7, %s789
        %p791 = scmp.lt.s32.totalorder %s45, 1
        %s792 = scalar_select %p791, %s45, 1
        %s793 = smul.addr %s792, 4
        %s794 = smul.addr %s793, 4
        %s795 = scalar_lea.vmem %s10, %s794
        %p796 = scmp.lt.s32.totalorder %s45, 1
        %s797 = scalar_select %p796, %s45, 1
        %s798 = smul.addr %s797, 8
        %s799 = smul.addr %s798, 4
        %s800 = scalar_lea.vmem %s12, %s799
        %p801 = scmp.lt.s32.totalorder %s45, 1
        %s802 = scalar_select %p801, %s45, 1
        %s803 = scalar_lea.vmem %s13, %s802
        %p805 = scmp.eq.s32.totalorder %s45, 0
        // Predicated region
        $region101: #{tpu_custom_call.1} parent=75 // pred_check
          %p806 = pneg %p805
        $region102: #{tpu_custom_call.1} parent=75 // pred_check_branch
          %808 = sbr.rel (%p806) target = $region104
        $region103: #{tpu_custom_call.1} parent=75 // pred_region
          %v809 = vld [vmem:[%s629] sm:$0xff]
          %vm810 = vcmask 261120
          %811 = vst.msk [vmem:[%s768] sm:$0xff] %vm810, %v809
        $region104: #{tpu_custom_call.1} parent=75 // pred_fallthru
          _
        %v812 = vld [vmem:[%s768] sm:$0xff]
        %v813 = vld [vmem:[%s772] sm:$0xf]
        %v814 = vld [vmem:[%s786] sm:$0x1]
        %v815 = vld [vmem:[%s786 + $0x1] sm:$0x1]
        %v816 = vld [vmem:[%s786 + $0x2] sm:$0x1]
        %v817 = vld [vmem:[%s786 + $0x3] sm:$0x1]
        %v818 = vand.u32 2147483647, %v814
        %v819 = vand.u32 2147483647, %v815
        %v820 = vand.u32 2147483647, %v816
        %v821 = vand.u32 2147483647, %v817
        %v822 = vld [vmem:[%s790] sm:$0x1]
        %v823 = vld [vmem:[%s790 + $0x1] sm:$0x1]
        %v824 = vld [vmem:[%s790 + $0x2] sm:$0x1]
        %v825 = vld [vmem:[%s790 + $0x3] sm:$0x1]
        %v826 = vand.u32 2147483647, %v822
        %v827 = vand.u32 2147483647, %v823
        %v828 = vand.u32 2147483647, %v824
        %v829 = vand.u32 2147483647, %v825
        %v834 = vlaneseq
        %v835 = vshrl.u32 %v834, 7
        %v836 = vsub.s32 0, %v835
        %v837 = vrot.slane %v818, %v836
        %v838 = vlaneseq
        %v839 = vshrl.u32 %v838, 7
        %v840 = vsub.s32 0, %v839
        %v841 = vrot.slane %v819, %v840
        %v842 = vlaneseq
        %v843 = vshrl.u32 %v842, 7
        %v844 = vsub.s32 0, %v843
        %v845 = vrot.slane %v820, %v844
        %v846 = vlaneseq
        %v847 = vshrl.u32 %v846, 7
        %v848 = vsub.s32 0, %v847
        %v849 = vrot.slane %v821, %v848
        %850 = vset.pattern.permute.xlu0 0
        %851 = vperm.xlu0 %850, %v837
        %v852 = vpop.permute.xlu0 %851
        %854 = vset.pattern.permute.xlu0 0
        %855 = vperm.xlu0 %854, %v841
        %v856 = vpop.permute.xlu0 %855
        %858 = vset.pattern.permute.xlu0 0
        %859 = vperm.xlu0 %858, %v845
        %v860 = vpop.permute.xlu0 %859
        %862 = vset.pattern.permute.xlu0 0
        %863 = vperm.xlu0 %862, %v849
        %v864 = vpop.permute.xlu0 %863
        %v866 = vmul.f32 %v852, %v813
        %v867 = vmul.f32 %v856, %v813
        %v868 = vmul.f32 %v860, %v813
        %v869 = vmul.f32 %v864, %v813
        %v874 = vlaneseq
        %v875 = vshrl.u32 %v874, 7
        %v876 = vsub.s32 0, %v875
        %v877 = vrot.slane %v826, %v876
        %v878 = vlaneseq
        %v879 = vshrl.u32 %v878, 7
        %v880 = vsub.s32 0, %v879
        %v881 = vrot.slane %v827, %v880
        %v882 = vlaneseq
        %v883 = vshrl.u32 %v882, 7
        %v884 = vsub.s32 0, %v883
        %v885 = vrot.slane %v828, %v884
        %v886 = vlaneseq
        %v887 = vshrl.u32 %v886, 7
        %v888 = vsub.s32 0, %v887
        %v889 = vrot.slane %v829, %v888
        %890 = vset.pattern.permute.xlu0 0
        %891 = vperm.xlu0 %890, %v877
        %v892 = vpop.permute.xlu0 %891
        %894 = vset.pattern.permute.xlu0 0
        %895 = vperm.xlu0 %894, %v881
        %v896 = vpop.permute.xlu0 %895
        %898 = vset.pattern.permute.xlu0 0
        %899 = vperm.xlu0 %898, %v885
        %v900 = vpop.permute.xlu0 %899
        %902 = vset.pattern.permute.xlu0 0
        %903 = vperm.xlu0 %902, %v889
        %v904 = vpop.permute.xlu0 %903
        %v906 = vsub.f32 %v892, %v866
        %v907 = vsub.f32 %v896, %v867
        %v908 = vsub.f32 %v900, %v868
        %v909 = vsub.f32 %v904, %v869
        %v910 = vxor.u32 %v906, 2147483648
        %v911 = vxor.u32 %v907, 2147483648
        %v912 = vxor.u32 %v908, 2147483648
        %v913 = vxor.u32 %v909, 2147483648
        %v914 = vmul.f32 %v910, 1.442695
        %v915 = vpow.pop %v914
        %v916 = vmul.f32 %v911, 1.442695
        %v917 = vpow.pop %v916
        %v918 = vmul.f32 %v912, 1.442695
        %v919 = vpow.pop %v918
        %v920 = vmul.f32 %v913, 1.442695
        %v921 = vpow.pop %v920
        %v922 = vadd.f32 %v915, 1.0
        %v923 = vadd.f32 %v917, 1.0
        %v924 = vadd.f32 %v919, 1.0
        %v925 = vadd.f32 %v921, 1.0
        %v926 = vrcp.pop %v922
        %v927 = vmul.f32 1.0, %v926
        %v928 = vrcp.pop %v923
        %v929 = vmul.f32 1.0, %v928
        %v930 = vrcp.pop %v924
        %v931 = vmul.f32 1.0, %v930
        %v932 = vrcp.pop %v925
        %v933 = vmul.f32 1.0, %v932
        %v934 = vlaneseq
        %v935 = vshrl.u32 %v934, 7
        %v936 = vlaneseq
        %v937 = vand.u32 %v936, 127
        %v938 = vmul.u32 %v937, 2
        %vm939 = vcmp.ge.s32.totalorder %v935, %v938
        %v940 = vadd.s32 %v937, 1
        %v941 = vmul.u32 %v940, 2
        %vm942 = vcmp.lt.s32.totalorder %v935, %v941
        %vm943 = vmand %vm939, %vm942
        %v944 = vsel %vm943, 1, 0
        %v945 = vcvt.s32.f32 %v944
        %v946 = vmul.u32 %v935, 2
        %vm947 = vcmp.ge.s32.totalorder %v937, %v946
        %v948 = vadd.s32 %v935, 1
        %v949 = vmul.u32 %v948, 2
        %vm950 = vcmp.lt.s32.totalorder %v937, %v949
        %vm951 = vmand %vm947, %vm950
        %v952 = vsel %vm951, 1, 0
        %v953 = vcvt.s32.f32 %v952
        %vm954 = vcmask 31744
        %v956 = vsel %vm954, %v927, 0
        %vm958 = vcmask 1043456
        %v960 = vsel %vm958, %v953, 0
        %962 = vmatprep.subr.mxu0 0.0
        %963 = vmatpush1.msra.mxu0 0.0
        %964 = vmatprep.subr.mxu0 0.0
        %965 = vmatpush1.msra.mxu0 0.0
        %966 = vmatprep.subr.mxu0 0.0
        %967 = vmatpush1.msra.mxu0 0.0
        %968 = vmatprep.subr.mxu0 0.0
        %969 = vmatpush1.msra.mxu0 0.0
        %970 = vmatprep.subr.mxu0 0.0
        %971 = vmatpush1.msra.mxu0 0.0
        %972 = vmatprep.subr.mxu0 0.0
        %973 = vmatpush1.msra.mxu0 0.0
        %974 = vmatprep.subr.mxu0 0.0
        %975 = vmatpush1.msra.mxu0 0.0
        %976 = vmatprep.subr.mxu0 0.0
        %977 = vmatpush1.msra.mxu0 0.0
        %978 = vmatprep.subr.mxu0 0.0
        %979 = vmatpush1.msra.mxu0 0.0
        %980 = vmatprep.subr.mxu0 0.0
        %981 = vmatpush1.msra.mxu0 0.0
        %982 = vmatprep.subr.mxu0 0.0
        %983 = vmatpush1.msra.mxu0 0.0
        %984 = vmatprep.subr.mxu0 0.0
        %985 = vmatpush1.msra.mxu0 0.0
        %986 = vmatprep.subr.mxu0 0.0
        %987 = vmatpush1.msra.mxu0 0.0
        %988 = vmatprep.subr.mxu0 0.0
        %989 = vmatpush1.msra.mxu0 0.0
        %990 = vmatprep.subr.mxu0 0.0
        %991 = vmatpush1.msra.mxu0 0.0
        %992 = vmatprep.subr.mxu0 0.0
        %993 = vmatpush1.msra.mxu0 %v960
        %994 = vmatprep.subr.mxu0 0.0
        %995 = vmatpush2.msra.mxu0 0.0
        %996 = vmatprep.subr.mxu0 0.0
        %997 = vmatpush2.msra.mxu0 0.0
        %998 = vmatprep.subr.mxu0 0.0
        %999 = vmatpush2.msra.mxu0 0.0
        %1000 = vmatprep.subr.mxu0 0.0
        %1001 = vmatpush2.msra.mxu0 0.0
        %1002 = vmatprep.subr.mxu0 0.0
        %1003 = vmatpush2.msra.mxu0 0.0
        %1004 = vmatprep.subr.mxu0 0.0
        %1005 = vmatpush2.msra.mxu0 0.0
        %1006 = vmatprep.subr.mxu0 0.0
        %1007 = vmatpush2.msra.mxu0 0.0
        %1008 = vmatprep.subr.mxu0 0.0
        %1009 = vmatpush2.msra.mxu0 0.0
        %1010 = vmatprep.subr.mxu0 0.0
        %1011 = vmatpush2.msra.mxu0 0.0
        %1012 = vmatprep.subr.mxu0 0.0
        %1013 = vmatpush2.msra.mxu0 0.0
        %1014 = vmatprep.subr.mxu0 0.0
        %1015 = vmatpush2.msra.mxu0 0.0
        %1016 = vmatprep.subr.mxu0 0.0
        %1017 = vmatpush2.msra.mxu0 0.0
        %1018 = vmatprep.subr.mxu0 0.0
        %1019 = vmatpush2.msra.mxu0 0.0
        %1020 = vmatprep.subr.mxu0 0.0
        %1021 = vmatpush2.msra.mxu0 0.0
        %1022 = vmatprep.subr.mxu0 0.0
        %1023 = vmatpush2.msra.mxu0 0.0
        %1024 = vmatprep.subr.mxu0 0.0
        %1025 = vmatpush2.msra.mxu0 0.0
        %1026 = vmatprep.mubr.f32.mxu0 0.0
        %1027 = vmatmul.mubr.f32.gmra.mxu0 %v956
        %v1028 = vpop.f32.mrf.mxu0
        %v1029 = vadd.f32 0.0, %v1028
        %v1030 = vpop.f32.mrf.mxu0
        %1031 = vdwg.mxu0
        %v1033 = vsel %vm954, %v929, 0
        %1035 = vmatprep.subr.mxu0 0.0
        %1036 = vmatpush1.msra.mxu0 0.0
        %1037 = vmatprep.subr.mxu0 0.0
        %1038 = vmatpush1.msra.mxu0 0.0
        %1039 = vmatprep.subr.mxu0 0.0
        %1040 = vmatpush1.msra.mxu0 0.0
        %1041 = vmatprep.subr.mxu0 0.0
        %1042 = vmatpush1.msra.mxu0 0.0
        %1043 = vmatprep.subr.mxu0 0.0
        %1044 = vmatpush1.msra.mxu0 0.0
        %1045 = vmatprep.subr.mxu0 0.0
        %1046 = vmatpush1.msra.mxu0 0.0
        %1047 = vmatprep.subr.mxu0 0.0
        %1048 = vmatpush1.msra.mxu0 0.0
        %1049 = vmatprep.subr.mxu0 0.0
        %1050 = vmatpush1.msra.mxu0 0.0
        %1051 = vmatprep.subr.mxu0 0.0
        %1052 = vmatpush1.msra.mxu0 0.0
        %1053 = vmatprep.subr.mxu0 0.0
        %1054 = vmatpush1.msra.mxu0 0.0
        %1055 = vmatprep.subr.mxu0 0.0
        %1056 = vmatpush1.msra.mxu0 0.0
        %1057 = vmatprep.subr.mxu0 0.0
        %1058 = vmatpush1.msra.mxu0 0.0
        %1059 = vmatprep.subr.mxu0 0.0
        %1060 = vmatpush1.msra.mxu0 0.0
        %1061 = vmatprep.subr.mxu0 0.0
        %1062 = vmatpush1.msra.mxu0 0.0
        %1063 = vmatprep.subr.mxu0 0.0
        %1064 = vmatpush1.msra.mxu0 0.0
        %1065 = vmatprep.subr.mxu0 0.0
        %1066 = vmatpush1.msra.mxu0 %v960
        %1067 = vmatprep.subr.mxu0 0.0
        %1068 = vmatpush2.msra.mxu0 0.0
        %1069 = vmatprep.subr.mxu0 0.0
        %1070 = vmatpush2.msra.mxu0 0.0
        %1071 = vmatprep.subr.mxu0 0.0
        %1072 = vmatpush2.msra.mxu0 0.0
        %1073 = vmatprep.subr.mxu0 0.0
        %1074 = vmatpush2.msra.mxu0 0.0
        %1075 = vmatprep.subr.mxu0 0.0
        %1076 = vmatpush2.msra.mxu0 0.0
        %1077 = vmatprep.subr.mxu0 0.0
        %1078 = vmatpush2.msra.mxu0 0.0
        %1079 = vmatprep.subr.mxu0 0.0
        %1080 = vmatpush2.msra.mxu0 0.0
        %1081 = vmatprep.subr.mxu0 0.0
        %1082 = vmatpush2.msra.mxu0 0.0
        %1083 = vmatprep.subr.mxu0 0.0
        %1084 = vmatpush2.msra.mxu0 0.0
        %1085 = vmatprep.subr.mxu0 0.0
        %1086 = vmatpush2.msra.mxu0 0.0
        %1087 = vmatprep.subr.mxu0 0.0
        %1088 = vmatpush2.msra.mxu0 0.0
        %1089 = vmatprep.subr.mxu0 0.0
        %1090 = vmatpush2.msra.mxu0 0.0
        %1091 = vmatprep.subr.mxu0 0.0
        %1092 = vmatpush2.msra.mxu0 0.0
        %1093 = vmatprep.subr.mxu0 0.0
        %1094 = vmatpush2.msra.mxu0 0.0
        %1095 = vmatprep.subr.mxu0 0.0
        %1096 = vmatpush2.msra.mxu0 0.0
        %1097 = vmatprep.subr.mxu0 0.0
        %1098 = vmatpush2.msra.mxu0 0.0
        %1099 = vmatprep.mubr.f32.mxu0 0.0
        %1100 = vmatmul.mubr.f32.gmra.mxu0 %v1033
        %v1101 = vpop.f32.mrf.mxu0
        %v1102 = vadd.f32 0.0, %v1101
        %v1103 = vpop.f32.mrf.mxu0
        %1104 = vdwg.mxu0
        %v1106 = vsel %vm954, %v931, 0
        %1108 = vmatprep.subr.mxu0 0.0
        %1109 = vmatpush1.msra.mxu0 0.0
        %1110 = vmatprep.subr.mxu0 0.0
        %1111 = vmatpush1.msra.mxu0 0.0
        %1112 = vmatprep.subr.mxu0 0.0
        %1113 = vmatpush1.msra.mxu0 0.0
        %1114 = vmatprep.subr.mxu0 0.0
        %1115 = vmatpush1.msra.mxu0 0.0
        %1116 = vmatprep.subr.mxu0 0.0
        %1117 = vmatpush1.msra.mxu0 0.0
        %1118 = vmatprep.subr.mxu0 0.0
        %1119 = vmatpush1.msra.mxu0 0.0
        %1120 = vmatprep.subr.mxu0 0.0
        %1121 = vmatpush1.msra.mxu0 0.0
        %1122 = vmatprep.subr.mxu0 0.0
        %1123 = vmatpush1.msra.mxu0 0.0
        %1124 = vmatprep.subr.mxu0 0.0
        %1125 = vmatpush1.msra.mxu0 0.0
        %1126 = vmatprep.subr.mxu0 0.0
        %1127 = vmatpush1.msra.mxu0 0.0
        %1128 = vmatprep.subr.mxu0 0.0
        %1129 = vmatpush1.msra.mxu0 0.0
        %1130 = vmatprep.subr.mxu0 0.0
        %1131 = vmatpush1.msra.mxu0 0.0
        %1132 = vmatprep.subr.mxu0 0.0
        %1133 = vmatpush1.msra.mxu0 0.0
        %1134 = vmatprep.subr.mxu0 0.0
        %1135 = vmatpush1.msra.mxu0 0.0
        %1136 = vmatprep.subr.mxu0 0.0
        %1137 = vmatpush1.msra.mxu0 0.0
        %1138 = vmatprep.subr.mxu0 0.0
        %1139 = vmatpush1.msra.mxu0 %v960
        %1140 = vmatprep.subr.mxu0 0.0
        %1141 = vmatpush2.msra.mxu0 0.0
        %1142 = vmatprep.subr.mxu0 0.0
        %1143 = vmatpush2.msra.mxu0 0.0
        %1144 = vmatprep.subr.mxu0 0.0
        %1145 = vmatpush2.msra.mxu0 0.0
        %1146 = vmatprep.subr.mxu0 0.0
        %1147 = vmatpush2.msra.mxu0 0.0
        %1148 = vmatprep.subr.mxu0 0.0
        %1149 = vmatpush2.msra.mxu0 0.0
        %1150 = vmatprep.subr.mxu0 0.0
        %1151 = vmatpush2.msra.mxu0 0.0
        %1152 = vmatprep.subr.mxu0 0.0
        %1153 = vmatpush2.msra.mxu0 0.0
        %1154 = vmatprep.subr.mxu0 0.0
        %1155 = vmatpush2.msra.mxu0 0.0
        %1156 = vmatprep.subr.mxu0 0.0
        %1157 = vmatpush2.msra.mxu0 0.0
        %1158 = vmatprep.subr.mxu0 0.0
        %1159 = vmatpush2.msra.mxu0 0.0
        %1160 = vmatprep.subr.mxu0 0.0
        %1161 = vmatpush2.msra.mxu0 0.0
        %1162 = vmatprep.subr.mxu0 0.0
        %1163 = vmatpush2.msra.mxu0 0.0
        %1164 = vmatprep.subr.mxu0 0.0
        %1165 = vmatpush2.msra.mxu0 0.0
        %1166 = vmatprep.subr.mxu0 0.0
        %1167 = vmatpush2.msra.mxu0 0.0
        %1168 = vmatprep.subr.mxu0 0.0
        %1169 = vmatpush2.msra.mxu0 0.0
        %1170 = vmatprep.subr.mxu0 0.0
        %1171 = vmatpush2.msra.mxu0 0.0
        %1172 = vmatprep.mubr.f32.mxu0 0.0
        %1173 = vmatmul.mubr.f32.gmra.mxu0 %v1106
        %v1174 = vpop.f32.mrf.mxu0
        %v1175 = vadd.f32 0.0, %v1174
        %v1176 = vpop.f32.mrf.mxu0
        %1177 = vdwg.mxu0
        %v1179 = vsel %vm954, %v933, 0
        %1181 = vmatprep.subr.mxu0 0.0
        %1182 = vmatpush1.msra.mxu0 0.0
        %1183 = vmatprep.subr.mxu0 0.0
        %1184 = vmatpush1.msra.mxu0 0.0
        %1185 = vmatprep.subr.mxu0 0.0
        %1186 = vmatpush1.msra.mxu0 0.0
        %1187 = vmatprep.subr.mxu0 0.0
        %1188 = vmatpush1.msra.mxu0 0.0
        %1189 = vmatprep.subr.mxu0 0.0
        %1190 = vmatpush1.msra.mxu0 0.0
        %1191 = vmatprep.subr.mxu0 0.0
        %1192 = vmatpush1.msra.mxu0 0.0
        %1193 = vmatprep.subr.mxu0 0.0
        %1194 = vmatpush1.msra.mxu0 0.0
        %1195 = vmatprep.subr.mxu0 0.0
        %1196 = vmatpush1.msra.mxu0 0.0
        %1197 = vmatprep.subr.mxu0 0.0
        %1198 = vmatpush1.msra.mxu0 0.0
        %1199 = vmatprep.subr.mxu0 0.0
        %1200 = vmatpush1.msra.mxu0 0.0
        %1201 = vmatprep.subr.mxu0 0.0
        %1202 = vmatpush1.msra.mxu0 0.0
        %1203 = vmatprep.subr.mxu0 0.0
        %1204 = vmatpush1.msra.mxu0 0.0
        %1205 = vmatprep.subr.mxu0 0.0
        %1206 = vmatpush1.msra.mxu0 0.0
        %1207 = vmatprep.subr.mxu0 0.0
        %1208 = vmatpush1.msra.mxu0 0.0
        %1209 = vmatprep.subr.mxu0 0.0
        %1210 = vmatpush1.msra.mxu0 0.0
        %1211 = vmatprep.subr.mxu0 0.0
        %1212 = vmatpush1.msra.mxu0 %v960
        %1213 = vmatprep.subr.mxu0 0.0
        %1214 = vmatpush2.msra.mxu0 0.0
        %1215 = vmatprep.subr.mxu0 0.0
        %1216 = vmatpush2.msra.mxu0 0.0
        %1217 = vmatprep.subr.mxu0 0.0
        %1218 = vmatpush2.msra.mxu0 0.0
        %1219 = vmatprep.subr.mxu0 0.0
        %1220 = vmatpush2.msra.mxu0 0.0
        %1221 = vmatprep.subr.mxu0 0.0
        %1222 = vmatpush2.msra.mxu0 0.0
        %1223 = vmatprep.subr.mxu0 0.0
        %1224 = vmatpush2.msra.mxu0 0.0
        %1225 = vmatprep.subr.mxu0 0.0
        %1226 = vmatpush2.msra.mxu0 0.0
        %1227 = vmatprep.subr.mxu0 0.0
        %1228 = vmatpush2.msra.mxu0 0.0
        %1229 = vmatprep.subr.mxu0 0.0
        %1230 = vmatpush2.msra.mxu0 0.0
        %1231 = vmatprep.subr.mxu0 0.0
        %1232 = vmatpush2.msra.mxu0 0.0
        %1233 = vmatprep.subr.mxu0 0.0
        %1234 = vmatpush2.msra.mxu0 0.0
        %1235 = vmatprep.subr.mxu0 0.0
        %1236 = vmatpush2.msra.mxu0 0.0
        %1237 = vmatprep.subr.mxu0 0.0
        %1238 = vmatpush2.msra.mxu0 0.0
        %1239 = vmatprep.subr.mxu0 0.0
        %1240 = vmatpush2.msra.mxu0 0.0
        %1241 = vmatprep.subr.mxu0 0.0
        %1242 = vmatpush2.msra.mxu0 0.0
        %1243 = vmatprep.subr.mxu0 0.0
        %1244 = vmatpush2.msra.mxu0 0.0
        %1245 = vmatprep.mubr.f32.mxu0 0.0
        %1246 = vmatmul.mubr.f32.gmra.mxu0 %v1179
        %v1247 = vpop.f32.mrf.mxu0
        %v1248 = vadd.f32 0.0, %v1247
        %v1249 = vpop.f32.mrf.mxu0
        %1250 = vdwg.mxu0
        %v1252 = vsel %vm954, %v945, 0
        %v1255 = vsel %vm958, %v1029, 0
        %1257 = vmatprep.subr.mxu0 0.0
        %1258 = vmatpush1.msra.mxu0 0.0
        %1259 = vmatprep.subr.mxu0 0.0
        %1260 = vmatpush1.msra.mxu0 0.0
        %1261 = vmatprep.subr.mxu0 0.0
        %1262 = vmatpush1.msra.mxu0 0.0
        %1263 = vmatprep.subr.mxu0 0.0
        %1264 = vmatpush1.msra.mxu0 0.0
        %1265 = vmatprep.subr.mxu0 0.0
        %1266 = vmatpush1.msra.mxu0 0.0
        %1267 = vmatprep.subr.mxu0 0.0
        %1268 = vmatpush1.msra.mxu0 0.0
        %1269 = vmatprep.subr.mxu0 0.0
        %1270 = vmatpush1.msra.mxu0 0.0
        %1271 = vmatprep.subr.mxu0 0.0
        %1272 = vmatpush1.msra.mxu0 0.0
        %1273 = vmatprep.subr.mxu0 0.0
        %1274 = vmatpush1.msra.mxu0 0.0
        %1275 = vmatprep.subr.mxu0 0.0
        %1276 = vmatpush1.msra.mxu0 0.0
        %1277 = vmatprep.subr.mxu0 0.0
        %1278 = vmatpush1.msra.mxu0 0.0
        %1279 = vmatprep.subr.mxu0 0.0
        %1280 = vmatpush1.msra.mxu0 0.0
        %1281 = vmatprep.subr.mxu0 0.0
        %1282 = vmatpush1.msra.mxu0 0.0
        %1283 = vmatprep.subr.mxu0 0.0
        %1284 = vmatpush1.msra.mxu0 0.0
        %1285 = vmatprep.subr.mxu0 0.0
        %1286 = vmatpush1.msra.mxu0 0.0
        %1287 = vmatprep.subr.mxu0 0.0
        %1288 = vmatpush1.msra.mxu0 %v1255
        %1289 = vmatprep.subr.mxu0 0.0
        %1290 = vmatpush2.msra.mxu0 0.0
        %1291 = vmatprep.subr.mxu0 0.0
        %1292 = vmatpush2.msra.mxu0 0.0
        %1293 = vmatprep.subr.mxu0 0.0
        %1294 = vmatpush2.msra.mxu0 0.0
        %1295 = vmatprep.subr.mxu0 0.0
        %1296 = vmatpush2.msra.mxu0 0.0
        %1297 = vmatprep.subr.mxu0 0.0
        %1298 = vmatpush2.msra.mxu0 0.0
        %1299 = vmatprep.subr.mxu0 0.0
        %1300 = vmatpush2.msra.mxu0 0.0
        %1301 = vmatprep.subr.mxu0 0.0
        %1302 = vmatpush2.msra.mxu0 0.0
        %1303 = vmatprep.subr.mxu0 0.0
        %1304 = vmatpush2.msra.mxu0 0.0
        %1305 = vmatprep.subr.mxu0 0.0
        %1306 = vmatpush2.msra.mxu0 0.0
        %1307 = vmatprep.subr.mxu0 0.0
        %1308 = vmatpush2.msra.mxu0 0.0
        %1309 = vmatprep.subr.mxu0 0.0
        %1310 = vmatpush2.msra.mxu0 0.0
        %1311 = vmatprep.subr.mxu0 0.0
        %1312 = vmatpush2.msra.mxu0 0.0
        %1313 = vmatprep.subr.mxu0 0.0
        %1314 = vmatpush2.msra.mxu0 0.0
        %1315 = vmatprep.subr.mxu0 0.0
        %1316 = vmatpush2.msra.mxu0 0.0
        %1317 = vmatprep.subr.mxu0 0.0
        %1318 = vmatpush2.msra.mxu0 0.0
        %1319 = vmatprep.subr.mxu0 0.0
        %1320 = vmatpush2.msra.mxu0 0.0
        %1321 = vmatprep.mubr.f32.mxu0 0.0
        %1322 = vmatmul.mubr.f32.gmra.mxu0 %v1252
        %v1323 = vpop.f32.mrf.mxu0
        %v1324 = vadd.f32 0.0, %v1323
        %v1325 = vpop.f32.mrf.mxu0
        %1326 = vdwg.mxu0
        %v1328 = vsel %vm958, %v1102, 0
        %1330 = vmatprep.subr.mxu0 0.0
        %1331 = vmatpush1.msra.mxu0 0.0
        %1332 = vmatprep.subr.mxu0 0.0
        %1333 = vmatpush1.msra.mxu0 0.0
        %1334 = vmatprep.subr.mxu0 0.0
        %1335 = vmatpush1.msra.mxu0 0.0
        %1336 = vmatprep.subr.mxu0 0.0
        %1337 = vmatpush1.msra.mxu0 0.0
        %1338 = vmatprep.subr.mxu0 0.0
        %1339 = vmatpush1.msra.mxu0 0.0
        %1340 = vmatprep.subr.mxu0 0.0
        %1341 = vmatpush1.msra.mxu0 0.0
        %1342 = vmatprep.subr.mxu0 0.0
        %1343 = vmatpush1.msra.mxu0 0.0
        %1344 = vmatprep.subr.mxu0 0.0
        %1345 = vmatpush1.msra.mxu0 0.0
        %1346 = vmatprep.subr.mxu0 0.0
        %1347 = vmatpush1.msra.mxu0 0.0
        %1348 = vmatprep.subr.mxu0 0.0
        %1349 = vmatpush1.msra.mxu0 0.0
        %1350 = vmatprep.subr.mxu0 0.0
        %1351 = vmatpush1.msra.mxu0 0.0
        %1352 = vmatprep.subr.mxu0 0.0
        %1353 = vmatpush1.msra.mxu0 0.0
        %1354 = vmatprep.subr.mxu0 0.0
        %1355 = vmatpush1.msra.mxu0 0.0
        %1356 = vmatprep.subr.mxu0 0.0
        %1357 = vmatpush1.msra.mxu0 0.0
        %1358 = vmatprep.subr.mxu0 0.0
        %1359 = vmatpush1.msra.mxu0 0.0
        %1360 = vmatprep.subr.mxu0 0.0
        %1361 = vmatpush1.msra.mxu0 %v1328
        %1362 = vmatprep.subr.mxu0 0.0
        %1363 = vmatpush2.msra.mxu0 0.0
        %1364 = vmatprep.subr.mxu0 0.0
        %1365 = vmatpush2.msra.mxu0 0.0
        %1366 = vmatprep.subr.mxu0 0.0
        %1367 = vmatpush2.msra.mxu0 0.0
        %1368 = vmatprep.subr.mxu0 0.0
        %1369 = vmatpush2.msra.mxu0 0.0
        %1370 = vmatprep.subr.mxu0 0.0
        %1371 = vmatpush2.msra.mxu0 0.0
        %1372 = vmatprep.subr.mxu0 0.0
        %1373 = vmatpush2.msra.mxu0 0.0
        %1374 = vmatprep.subr.mxu0 0.0
        %1375 = vmatpush2.msra.mxu0 0.0
        %1376 = vmatprep.subr.mxu0 0.0
        %1377 = vmatpush2.msra.mxu0 0.0
        %1378 = vmatprep.subr.mxu0 0.0
        %1379 = vmatpush2.msra.mxu0 0.0
        %1380 = vmatprep.subr.mxu0 0.0
        %1381 = vmatpush2.msra.mxu0 0.0
        %1382 = vmatprep.subr.mxu0 0.0
        %1383 = vmatpush2.msra.mxu0 0.0
        %1384 = vmatprep.subr.mxu0 0.0
        %1385 = vmatpush2.msra.mxu0 0.0
        %1386 = vmatprep.subr.mxu0 0.0
        %1387 = vmatpush2.msra.mxu0 0.0
        %1388 = vmatprep.subr.mxu0 0.0
        %1389 = vmatpush2.msra.mxu0 0.0
        %1390 = vmatprep.subr.mxu0 0.0
        %1391 = vmatpush2.msra.mxu0 0.0
        %1392 = vmatprep.subr.mxu0 0.0
        %1393 = vmatpush2.msra.mxu0 0.0
        %1394 = vmatprep.mubr.f32.mxu0 0.0
        %1395 = vmatmul.mubr.f32.gmra.mxu0 %v1252
        %v1396 = vpop.f32.mrf.mxu0
        %v1397 = vadd.f32 0.0, %v1396
        %v1398 = vpop.f32.mrf.mxu0
        %1399 = vdwg.mxu0
        %v1401 = vsel %vm958, %v1175, 0
        %1403 = vmatprep.subr.mxu0 0.0
        %1404 = vmatpush1.msra.mxu0 0.0
        %1405 = vmatprep.subr.mxu0 0.0
        %1406 = vmatpush1.msra.mxu0 0.0
        %1407 = vmatprep.subr.mxu0 0.0
        %1408 = vmatpush1.msra.mxu0 0.0
        %1409 = vmatprep.subr.mxu0 0.0
        %1410 = vmatpush1.msra.mxu0 0.0
        %1411 = vmatprep.subr.mxu0 0.0
        %1412 = vmatpush1.msra.mxu0 0.0
        %1413 = vmatprep.subr.mxu0 0.0
        %1414 = vmatpush1.msra.mxu0 0.0
        %1415 = vmatprep.subr.mxu0 0.0
        %1416 = vmatpush1.msra.mxu0 0.0
        %1417 = vmatprep.subr.mxu0 0.0
        %1418 = vmatpush1.msra.mxu0 0.0
        %1419 = vmatprep.subr.mxu0 0.0
        %1420 = vmatpush1.msra.mxu0 0.0
        %1421 = vmatprep.subr.mxu0 0.0
        %1422 = vmatpush1.msra.mxu0 0.0
        %1423 = vmatprep.subr.mxu0 0.0
        %1424 = vmatpush1.msra.mxu0 0.0
        %1425 = vmatprep.subr.mxu0 0.0
        %1426 = vmatpush1.msra.mxu0 0.0
        %1427 = vmatprep.subr.mxu0 0.0
        %1428 = vmatpush1.msra.mxu0 0.0
        %1429 = vmatprep.subr.mxu0 0.0
        %1430 = vmatpush1.msra.mxu0 0.0
        %1431 = vmatprep.subr.mxu0 0.0
        %1432 = vmatpush1.msra.mxu0 0.0
        %1433 = vmatprep.subr.mxu0 0.0
        %1434 = vmatpush1.msra.mxu0 %v1401
        %1435 = vmatprep.subr.mxu0 0.0
        %1436 = vmatpush2.msra.mxu0 0.0
        %1437 = vmatprep.subr.mxu0 0.0
        %1438 = vmatpush2.msra.mxu0 0.0
        %1439 = vmatprep.subr.mxu0 0.0
        %1440 = vmatpush2.msra.mxu0 0.0
        %1441 = vmatprep.subr.mxu0 0.0
        %1442 = vmatpush2.msra.mxu0 0.0
        %1443 = vmatprep.subr.mxu0 0.0
        %1444 = vmatpush2.msra.mxu0 0.0
        %1445 = vmatprep.subr.mxu0 0.0
        %1446 = vmatpush2.msra.mxu0 0.0
        %1447 = vmatprep.subr.mxu0 0.0
        %1448 = vmatpush2.msra.mxu0 0.0
        %1449 = vmatprep.subr.mxu0 0.0
        %1450 = vmatpush2.msra.mxu0 0.0
        %1451 = vmatprep.subr.mxu0 0.0
        %1452 = vmatpush2.msra.mxu0 0.0
        %1453 = vmatprep.subr.mxu0 0.0
        %1454 = vmatpush2.msra.mxu0 0.0
        %1455 = vmatprep.subr.mxu0 0.0
        %1456 = vmatpush2.msra.mxu0 0.0
        %1457 = vmatprep.subr.mxu0 0.0
        %1458 = vmatpush2.msra.mxu0 0.0
        %1459 = vmatprep.subr.mxu0 0.0
        %1460 = vmatpush2.msra.mxu0 0.0
        %1461 = vmatprep.subr.mxu0 0.0
        %1462 = vmatpush2.msra.mxu0 0.0
        %1463 = vmatprep.subr.mxu0 0.0
        %1464 = vmatpush2.msra.mxu0 0.0
        %1465 = vmatprep.subr.mxu0 0.0
        %1466 = vmatpush2.msra.mxu0 0.0
        %1467 = vmatprep.mubr.f32.mxu0 0.0
        %1468 = vmatmul.mubr.f32.gmra.mxu0 %v1252
        %v1469 = vpop.f32.mrf.mxu0
        %v1470 = vadd.f32 0.0, %v1469
        %v1471 = vpop.f32.mrf.mxu0
        %1472 = vdwg.mxu0
        %v1474 = vsel %vm958, %v1248, 0
        %1476 = vmatprep.subr.mxu0 0.0
        %1477 = vmatpush1.msra.mxu0 0.0
        %1478 = vmatprep.subr.mxu0 0.0
        %1479 = vmatpush1.msra.mxu0 0.0
        %1480 = vmatprep.subr.mxu0 0.0
        %1481 = vmatpush1.msra.mxu0 0.0
        %1482 = vmatprep.subr.mxu0 0.0
        %1483 = vmatpush1.msra.mxu0 0.0
        %1484 = vmatprep.subr.mxu0 0.0
        %1485 = vmatpush1.msra.mxu0 0.0
        %1486 = vmatprep.subr.mxu0 0.0
        %1487 = vmatpush1.msra.mxu0 0.0
        %1488 = vmatprep.subr.mxu0 0.0
        %1489 = vmatpush1.msra.mxu0 0.0
        %1490 = vmatprep.subr.mxu0 0.0
        %1491 = vmatpush1.msra.mxu0 0.0
        %1492 = vmatprep.subr.mxu0 0.0
        %1493 = vmatpush1.msra.mxu0 0.0
        %1494 = vmatprep.subr.mxu0 0.0
        %1495 = vmatpush1.msra.mxu0 0.0
        %1496 = vmatprep.subr.mxu0 0.0
        %1497 = vmatpush1.msra.mxu0 0.0
        %1498 = vmatprep.subr.mxu0 0.0
        %1499 = vmatpush1.msra.mxu0 0.0
        %1500 = vmatprep.subr.mxu0 0.0
        %1501 = vmatpush1.msra.mxu0 0.0
        %1502 = vmatprep.subr.mxu0 0.0
        %1503 = vmatpush1.msra.mxu0 0.0
        %1504 = vmatprep.subr.mxu0 0.0
        %1505 = vmatpush1.msra.mxu0 0.0
        %1506 = vmatprep.subr.mxu0 0.0
        %1507 = vmatpush1.msra.mxu0 %v1474
        %1508 = vmatprep.subr.mxu0 0.0
        %1509 = vmatpush2.msra.mxu0 0.0
        %1510 = vmatprep.subr.mxu0 0.0
        %1511 = vmatpush2.msra.mxu0 0.0
        %1512 = vmatprep.subr.mxu0 0.0
        %1513 = vmatpush2.msra.mxu0 0.0
        %1514 = vmatprep.subr.mxu0 0.0
        %1515 = vmatpush2.msra.mxu0 0.0
        %1516 = vmatprep.subr.mxu0 0.0
        %1517 = vmatpush2.msra.mxu0 0.0
        %1518 = vmatprep.subr.mxu0 0.0
        %1519 = vmatpush2.msra.mxu0 0.0
        %1520 = vmatprep.subr.mxu0 0.0
        %1521 = vmatpush2.msra.mxu0 0.0
        %1522 = vmatprep.subr.mxu0 0.0
        %1523 = vmatpush2.msra.mxu0 0.0
        %1524 = vmatprep.subr.mxu0 0.0
        %1525 = vmatpush2.msra.mxu0 0.0
        %1526 = vmatprep.subr.mxu0 0.0
        %1527 = vmatpush2.msra.mxu0 0.0
        %1528 = vmatprep.subr.mxu0 0.0
        %1529 = vmatpush2.msra.mxu0 0.0
        %1530 = vmatprep.subr.mxu0 0.0
        %1531 = vmatpush2.msra.mxu0 0.0
        %1532 = vmatprep.subr.mxu0 0.0
        %1533 = vmatpush2.msra.mxu0 0.0
        %1534 = vmatprep.subr.mxu0 0.0
        %1535 = vmatpush2.msra.mxu0 0.0
        %1536 = vmatprep.subr.mxu0 0.0
        %1537 = vmatpush2.msra.mxu0 0.0
        %1538 = vmatprep.subr.mxu0 0.0
        %1539 = vmatpush2.msra.mxu0 0.0
        %1540 = vmatprep.mubr.f32.mxu0 0.0
        %1541 = vmatmul.mubr.f32.gmra.mxu0 %v1252
        %v1542 = vpop.f32.mrf.mxu0
        %v1543 = vadd.f32 0.0, %v1542
        %v1544 = vpop.f32.mrf.mxu0
        %1545 = vdwg.mxu0
        %vm1546 = vcmask 261120
        %v1547 = vsel %vm1546, %v812, 0.0
        %1548 = vadd.xlane.f32.xlu0 %v1547
        %v1549 = vpop.xlane.xlu0 %1548
        %v1550 = vrcp.pop 32.0
        %v1551 = vmul.f32 %v1549, %v1550
        %v1552 = vsub.f32 %v812, %v1551
        %v1553 = vmul.f32 %v1552, %v1552
        %v1554 = vsel %vm1546, %v1553, 0.0
        %1555 = vadd.xlane.f32.xlu0 %v1554
        %v1556 = vpop.xlane.xlu0 %1555
        %v1557 = vmul.f32 %v1556, %v1550
        %v1558 = vadd.f32 %v1557, 1e-05
        %v1559 = vrsqrt.pop %v1558
        %v1560 = vmul.f32 %v1552, %v1559
        %v1561 = vld [vmem:[%s637] sm:$0x1]
        %v1563 = vlaneseq
        %v1564 = vshrl.u32 %v1563, 7
        %v1565 = vsub.s32 0, %v1564
        %v1566 = vrot.slane %v1561, %v1565
        %v1568 = vmul.f32 %v1560, %v1566
        %v1569 = vld [vmem:[%s645] sm:$0x1]
        %v1571 = vlaneseq
        %v1572 = vshrl.u32 %v1571, 7
        %v1573 = vsub.s32 0, %v1572
        %v1574 = vrot.slane %v1569, %v1573
        %v1576 = vadd.f32 %v1568, %v1574
        %v1577 = vpack.c.bf16 %v1576, %v1576
        %v1578 = vld [vmem:[%s777] sm:$0xf]
        %v1579 = vld [vmem:[%s777 + $0x4] sm:$0xf]
        %v1580 = vld [vmem:[%s777 + $0x8] sm:$0xf]
        %v1581 = vld [vmem:[%s777 + $0xc] sm:$0xf]
        %v1586 = vunpack.c.l.b16 %v1578
        %v1587 = vunpack.c.l.b16 %v1579
        %v1588 = vunpack.c.l.b16 %v1580
        %v1589 = vunpack.c.l.b16 %v1581
        %v1590 = vpack.c.b16 %v1587, %v1586
        %v1591 = vpack.c.b16 %v1589, %v1588
        %v1595 = vsel %vm1546, %v1577, 0
        %1597 = vmatprep.subr.bf16.mxu0 0
        %1598 = vmatpush1.bf16.msra.mxu0 0
        %1599 = vmatprep.subr.bf16.mxu0 0
        %1600 = vmatpush1.bf16.msra.mxu0 0
        %1601 = vmatprep.subr.bf16.mxu0 0
        %1602 = vmatpush1.bf16.msra.mxu0 0
        %1603 = vmatprep.subr.bf16.mxu0 0
        %1604 = vmatpush1.bf16.msra.mxu0 0
        %1605 = vmatprep.subr.bf16.mxu0 0
        %1606 = vmatpush1.bf16.msra.mxu0 0
        %1607 = vmatprep.subr.bf16.mxu0 0
        %1608 = vmatpush1.bf16.msra.mxu0 0
        %1609 = vmatprep.subr.bf16.mxu0 0
        %1610 = vmatpush1.bf16.msra.mxu0 %v1591
        %1611 = vmatprep.subr.bf16.mxu0 0
        %1612 = vmatpush1.bf16.msra.mxu0 %v1590
        %1613 = vmatprep.subr.bf16.mxu0 0
        %1614 = vmatpush2.bf16.msra.mxu0 0
        %1615 = vmatprep.subr.bf16.mxu0 0
        %1616 = vmatpush2.bf16.msra.mxu0 0
        %1617 = vmatprep.subr.bf16.mxu0 0
        %1618 = vmatpush2.bf16.msra.mxu0 0
        %1619 = vmatprep.subr.bf16.mxu0 0
        %1620 = vmatpush2.bf16.msra.mxu0 0
        %1621 = vmatprep.subr.bf16.mxu0 0
        %1622 = vmatpush2.bf16.msra.mxu0 0
        %1623 = vmatprep.subr.bf16.mxu0 0
        %1624 = vmatpush2.bf16.msra.mxu0 0
        %1625 = vmatprep.subr.bf16.mxu0 0
        %1626 = vmatpush2.bf16.msra.mxu0 0
        %1627 = vmatprep.subr.bf16.mxu0 0
        %1628 = vmatpush2.bf16.msra.mxu0 0
        %1629 = vmatprep.mubr.bf16.mxu0 0
        %1630 = vmatmul.mubr.bf16.gmra.mxu0 %v1595
        %v1631 = vpop.f32.mrf.mxu0
        %v1632 = vadd.f32 0.0, %v1631
        %v1633 = vpop.f32.mrf.mxu0
        %v1634 = vpop.f32.mrf.mxu0
        %v1635 = vpop.f32.mrf.mxu0
        %1636 = vdwg.mxu0
        %v1637 = vpack.c.bf16 %v1632, %v1632
        %1639 = vrot.lane.b32.xlu0 %v1637, 120
        %v1640 = vpop.permute.xlu0 %1639
        %1641 = vrot.lane.b32.xlu0 %v1637, 112
        %v1642 = vpop.permute.xlu0 %1641
        %1643 = vrot.lane.b32.xlu0 %v1637, 104
        %v1644 = vpop.permute.xlu0 %1643
        %1645 = vrot.lane.b32.xlu0 %v1637, 96
        %v1646 = vpop.permute.xlu0 %1645
        %vm1647 = vcmask 64512
        %v1649 = vsel %vm1647, %v1637, 0
        %v1652 = vsel %vm1647, %v1646, 0
        %1654 = vmatprep.subr.bf16.mxu0 0
        %1655 = vmatpush1.bf16.xpose.msra.mxu0 0
        %1656 = vmatprep.subr.bf16.mxu0 0
        %1657 = vmatpush1.bf16.xpose.msra.mxu0 0
        %1658 = vmatprep.subr.bf16.mxu0 0
        %1659 = vmatpush1.bf16.xpose.msra.mxu0 0
        %1660 = vmatprep.subr.bf16.mxu0 0
        %1661 = vmatpush1.bf16.xpose.msra.mxu0 0
        %1662 = vmatprep.subr.bf16.mxu0 0
        %1663 = vmatpush1.bf16.xpose.msra.mxu0 0
        %1664 = vmatprep.subr.bf16.mxu0 0
        %1665 = vmatpush1.bf16.xpose.msra.mxu0 0
        %1666 = vmatprep.subr.bf16.mxu0 0
        %1667 = vmatpush1.bf16.xpose.msra.mxu0 0
        %1668 = vmatprep.subr.bf16.mxu0 0
        %1669 = vmatpush1.bf16.xpose.msra.mxu0 %v1652
        %1670 = vmatprep.subr.bf16.mxu0 0
        %1671 = vmatpush2.bf16.xpose.msra.mxu0 0
        %1672 = vmatprep.subr.bf16.mxu0 0
        %1673 = vmatpush2.bf16.xpose.msra.mxu0 0
        %1674 = vmatprep.subr.bf16.mxu0 0
        %1675 = vmatpush2.bf16.xpose.msra.mxu0 0
        %1676 = vmatprep.subr.bf16.mxu0 0
        %1677 = vmatpush2.bf16.xpose.msra.mxu0 0
        %1678 = vmatprep.subr.bf16.mxu0 0
        %1679 = vmatpush2.bf16.xpose.msra.mxu0 0
        %1680 = vmatprep.subr.bf16.mxu0 0
        %1681 = vmatpush2.bf16.xpose.msra.mxu0 0
        %1682 = vmatprep.subr.bf16.mxu0 0
        %1683 = vmatpush2.bf16.xpose.msra.mxu0 0
        %1684 = vmatprep.subr.bf16.mxu0 0
        %1685 = vmatpush2.bf16.xpose.msra.mxu0 0
        %1686 = vmatprep.mubr.bf16.mxu0 0
        %1687 = vmatmul.mubr.bf16.gmra.mxu0 %v1649
        %v1688 = vpop.f32.mrf.mxu0
        %v1689 = vadd.f32 0.0, %v1688
        %v1690 = vpop.f32.mrf.mxu0
        %v1691 = vpop.f32.mrf.mxu0
        %v1692 = vpop.f32.mrf.mxu0
        %1693 = vdwg.mxu0
        %1694 = vrot.lane.b32.xlu0 %v1640, 96
        %v1695 = vpop.permute.xlu0 %1694
        %v1697 = vsel %vm1647, %v1640, 0
        %v1700 = vsel %vm1647, %v1695, 0
        %1702 = vmatprep.subr.bf16.mxu0 0
        %1703 = vmatpush1.bf16.xpose.msra.mxu0 0
        %1704 = vmatprep.subr.bf16.mxu0 0
        %1705 = vmatpush1.bf16.xpose.msra.mxu0 0
        %1706 = vmatprep.subr.bf16.mxu0 0
        %1707 = vmatpush1.bf16.xpose.msra.mxu0 0
        %1708 = vmatprep.subr.bf16.mxu0 0
        %1709 = vmatpush1.bf16.xpose.msra.mxu0 0
        %1710 = vmatprep.subr.bf16.mxu0 0
        %1711 = vmatpush1.bf16.xpose.msra.mxu0 0
        %1712 = vmatprep.subr.bf16.mxu0 0
        %1713 = vmatpush1.bf16.xpose.msra.mxu0 0
        %1714 = vmatprep.subr.bf16.mxu0 0
        %1715 = vmatpush1.bf16.xpose.msra.mxu0 0
        %1716 = vmatprep.subr.bf16.mxu0 0
        %1717 = vmatpush1.bf16.xpose.msra.mxu0 %v1700
        %1718 = vmatprep.subr.bf16.mxu0 0
        %1719 = vmatpush2.bf16.xpose.msra.mxu0 0
        %1720 = vmatprep.subr.bf16.mxu0 0
        %1721 = vmatpush2.bf16.xpose.msra.mxu0 0
        %1722 = vmatprep.subr.bf16.mxu0 0
        %1723 = vmatpush2.bf16.xpose.msra.mxu0 0
        %1724 = vmatprep.subr.bf16.mxu0 0
        %1725 = vmatpush2.bf16.xpose.msra.mxu0 0
        %1726 = vmatprep.subr.bf16.mxu0 0
        %1727 = vmatpush2.bf16.xpose.msra.mxu0 0
        %1728 = vmatprep.subr.bf16.mxu0 0
        %1729 = vmatpush2.bf16.xpose.msra.mxu0 0
        %1730 = vmatprep.subr.bf16.mxu0 0
        %1731 = vmatpush2.bf16.xpose.msra.mxu0 0
        %1732 = vmatprep.subr.bf16.mxu0 0
        %1733 = vmatpush2.bf16.xpose.msra.mxu0 0
        %1734 = vmatprep.mubr.bf16.mxu0 0
        %1735 = vmatmul.mubr.bf16.gmra.mxu0 %v1697
        %v1736 = vpop.f32.mrf.mxu0
        %v1737 = vadd.f32 0.0, %v1736
        %v1738 = vpop.f32.mrf.mxu0
        %v1739 = vpop.f32.mrf.mxu0
        %v1740 = vpop.f32.mrf.mxu0
        %1741 = vdwg.mxu0
        %1742 = vrot.lane.b32.xlu0 %v1642, 96
        %v1743 = vpop.permute.xlu0 %1742
        %v1745 = vsel %vm1647, %v1642, 0
        %v1748 = vsel %vm1647, %v1743, 0
        %1750 = vmatprep.subr.bf16.mxu0 0
        %1751 = vmatpush1.bf16.xpose.msra.mxu0 0
        %1752 = vmatprep.subr.bf16.mxu0 0
        %1753 = vmatpush1.bf16.xpose.msra.mxu0 0
        %1754 = vmatprep.subr.bf16.mxu0 0
        %1755 = vmatpush1.bf16.xpose.msra.mxu0 0
        %1756 = vmatprep.subr.bf16.mxu0 0
        %1757 = vmatpush1.bf16.xpose.msra.mxu0 0
        %1758 = vmatprep.subr.bf16.mxu0 0
        %1759 = vmatpush1.bf16.xpose.msra.mxu0 0
        %1760 = vmatprep.subr.bf16.mxu0 0
        %1761 = vmatpush1.bf16.xpose.msra.mxu0 0
        %1762 = vmatprep.subr.bf16.mxu0 0
        %1763 = vmatpush1.bf16.xpose.msra.mxu0 0
        %1764 = vmatprep.subr.bf16.mxu0 0
        %1765 = vmatpush1.bf16.xpose.msra.mxu0 %v1748
        %1766 = vmatprep.subr.bf16.mxu0 0
        %1767 = vmatpush2.bf16.xpose.msra.mxu0 0
        %1768 = vmatprep.subr.bf16.mxu0 0
        %1769 = vmatpush2.bf16.xpose.msra.mxu0 0
        %1770 = vmatprep.subr.bf16.mxu0 0
        %1771 = vmatpush2.bf16.xpose.msra.mxu0 0
        %1772 = vmatprep.subr.bf16.mxu0 0
        %1773 = vmatpush2.bf16.xpose.msra.mxu0 0
        %1774 = vmatprep.subr.bf16.mxu0 0
        %1775 = vmatpush2.bf16.xpose.msra.mxu0 0
        %1776 = vmatprep.subr.bf16.mxu0 0
        %1777 = vmatpush2.bf16.xpose.msra.mxu0 0
        %1778 = vmatprep.subr.bf16.mxu0 0
        %1779 = vmatpush2.bf16.xpose.msra.mxu0 0
        %1780 = vmatprep.subr.bf16.mxu0 0
        %1781 = vmatpush2.bf16.xpose.msra.mxu0 0
        %1782 = vmatprep.mubr.bf16.mxu0 0
        %1783 = vmatmul.mubr.bf16.gmra.mxu0 %v1745
        %v1784 = vpop.f32.mrf.mxu0
        %v1785 = vadd.f32 0.0, %v1784
        %v1786 = vpop.f32.mrf.mxu0
        %v1787 = vpop.f32.mrf.mxu0
        %v1788 = vpop.f32.mrf.mxu0
        %1789 = vdwg.mxu0
        %1790 = vrot.lane.b32.xlu0 %v1644, 96
        %v1791 = vpop.permute.xlu0 %1790
        %v1793 = vsel %vm1647, %v1644, 0
        %v1796 = vsel %vm1647, %v1791, 0
        %1798 = vmatprep.subr.bf16.mxu0 0
        %1799 = vmatpush1.bf16.xpose.msra.mxu0 0
        %1800 = vmatprep.subr.bf16.mxu0 0
        %1801 = vmatpush1.bf16.xpose.msra.mxu0 0
        %1802 = vmatprep.subr.bf16.mxu0 0
        %1803 = vmatpush1.bf16.xpose.msra.mxu0 0
        %1804 = vmatprep.subr.bf16.mxu0 0
        %1805 = vmatpush1.bf16.xpose.msra.mxu0 0
        %1806 = vmatprep.subr.bf16.mxu0 0
        %1807 = vmatpush1.bf16.xpose.msra.mxu0 0
        %1808 = vmatprep.subr.bf16.mxu0 0
        %1809 = vmatpush1.bf16.xpose.msra.mxu0 0
        %1810 = vmatprep.subr.bf16.mxu0 0
        %1811 = vmatpush1.bf16.xpose.msra.mxu0 0
        %1812 = vmatprep.subr.bf16.mxu0 0
        %1813 = vmatpush1.bf16.xpose.msra.mxu0 %v1796
        %1814 = vmatprep.subr.bf16.mxu0 0
        %1815 = vmatpush2.bf16.xpose.msra.mxu0 0
        %1816 = vmatprep.subr.bf16.mxu0 0
        %1817 = vmatpush2.bf16.xpose.msra.mxu0 0
        %1818 = vmatprep.subr.bf16.mxu0 0
        %1819 = vmatpush2.bf16.xpose.msra.mxu0 0
        %1820 = vmatprep.subr.bf16.mxu0 0
        %1821 = vmatpush2.bf16.xpose.msra.mxu0 0
        %1822 = vmatprep.subr.bf16.mxu0 0
        %1823 = vmatpush2.bf16.xpose.msra.mxu0 0
        %1824 = vmatprep.subr.bf16.mxu0 0
        %1825 = vmatpush2.bf16.xpose.msra.mxu0 0
        %1826 = vmatprep.subr.bf16.mxu0 0
        %1827 = vmatpush2.bf16.xpose.msra.mxu0 0
        %1828 = vmatprep.subr.bf16.mxu0 0
        %1829 = vmatpush2.bf16.xpose.msra.mxu0 0
        %1830 = vmatprep.mubr.bf16.mxu0 0
        %1831 = vmatmul.mubr.bf16.gmra.mxu0 %v1793
        %v1832 = vpop.f32.mrf.mxu0
        %v1833 = vadd.f32 0.0, %v1832
        %v1834 = vpop.f32.mrf.mxu0
        %v1835 = vpop.f32.mrf.mxu0
        %v1836 = vpop.f32.mrf.mxu0
        %1837 = vdwg.mxu0
        %v1838 = vmul.f32 %v1689, 0.35355338
        %v1839 = vmul.f32 %v1737, 0.35355338
        %v1840 = vmul.f32 %v1785, 0.35355338
        %v1841 = vmul.f32 %v1833, 0.35355338
        %v1842 = vmax.f32 %v1838, 0.0
        %v1843 = vmax.f32 %v1839, 0.0
        %v1844 = vmax.f32 %v1840, 0.0
        %v1845 = vmax.f32 %v1841, 0.0
        %v1846 = vmul.f32 %v1842, %v1324
        %v1847 = vmul.f32 %v1843, %v1397
        %v1848 = vmul.f32 %v1844, %v1470
        %v1849 = vmul.f32 %v1845, %v1543
        %v1850 = vsel %vm1647, %v1846, -inf
        %1851 = vmax.xlane.f32.xlu0 %v1850
        %v1852 = vpop.xlane.xlu0 %1851
        %v1853 = vsel %vm1647, %v1847, -inf
        %1854 = vmax.xlane.f32.xlu0 %v1853
        %v1855 = vpop.xlane.xlu0 %1854
        %v1856 = vsel %vm1647, %v1848, -inf
        %1857 = vmax.xlane.f32.xlu0 %v1856
        %v1858 = vpop.xlane.xlu0 %1857
        %v1859 = vsel %vm1647, %v1849, -inf
        %1860 = vmax.xlane.f32.xlu0 %v1859
        %v1861 = vpop.xlane.xlu0 %1860
        %v1862 = vsub.f32 %v1846, %v1852
        %v1863 = vsub.f32 %v1847, %v1855
        %v1864 = vsub.f32 %v1848, %v1858
        %v1865 = vsub.f32 %v1849, %v1861
        %v1866 = vmul.f32 %v1862, 1.442695
        %v1867 = vpow.pop %v1866
        %v1868 = vmul.f32 %v1863, 1.442695
        %v1869 = vpow.pop %v1868
        %v1870 = vmul.f32 %v1864, 1.442695
        %v1871 = vpow.pop %v1870
        %v1872 = vmul.f32 %v1865, 1.442695
        %v1873 = vpow.pop %v1872
        %v1874 = vsel %vm1647, %v1867, 0.0
        %1875 = vadd.xlane.f32.xlu0 %v1874
        %v1876 = vpop.xlane.xlu0 %1875
        %v1877 = vsel %vm1647, %v1869, 0.0
        %1878 = vadd.xlane.f32.xlu0 %v1877
        %v1879 = vpop.xlane.xlu0 %1878
        %v1880 = vsel %vm1647, %v1871, 0.0
        %1881 = vadd.xlane.f32.xlu0 %v1880
        %v1882 = vpop.xlane.xlu0 %1881
        %v1883 = vsel %vm1647, %v1873, 0.0
        %1884 = vadd.xlane.f32.xlu0 %v1883
        %v1885 = vpop.xlane.xlu0 %1884
        %v1886 = vrcp.pop %v1876
        %v1887 = vrcp.pop %v1879
        %v1888 = vrcp.pop %v1882
        %v1889 = vrcp.pop %v1885
        %v1890 = vmul.f32 %v1867, %v1886
        %v1891 = vmul.f32 %v1869, %v1887
        %v1892 = vmul.f32 %v1871, %v1888
        %v1893 = vmul.f32 %v1873, %v1889
        %v1894 = vpack.c.bf16 %v1890, %v1890
        %v1895 = vpack.c.bf16 %v1891, %v1891
        %v1896 = vpack.c.bf16 %v1892, %v1892
        %v1897 = vpack.c.bf16 %v1893, %v1893
        %1898 = vrot.lane.b32.xlu0 %v1637, 64
        %v1899 = vpop.permute.xlu0 %1898
        %v1901 = vsel %vm1647, %v1894, 0
        %v1904 = vsel %vm958, %v1899, 0
        %1906 = vmatprep.subr.bf16.mxu0 0
        %1907 = vmatpush1.bf16.msra.mxu0 0
        %1908 = vmatprep.subr.bf16.mxu0 0
        %1909 = vmatpush1.bf16.msra.mxu0 0
        %1910 = vmatprep.subr.bf16.mxu0 0
        %1911 = vmatpush1.bf16.msra.mxu0 0
        %1912 = vmatprep.subr.bf16.mxu0 0
        %1913 = vmatpush1.bf16.msra.mxu0 0
        %1914 = vmatprep.subr.bf16.mxu0 0
        %1915 = vmatpush1.bf16.msra.mxu0 0
        %1916 = vmatprep.subr.bf16.mxu0 0
        %1917 = vmatpush1.bf16.msra.mxu0 0
        %1918 = vmatprep.subr.bf16.mxu0 0
        %1919 = vmatpush1.bf16.msra.mxu0 0
        %1920 = vmatprep.subr.bf16.mxu0 0
        %1921 = vmatpush1.bf16.msra.mxu0 %v1904
        %1922 = vmatprep.subr.bf16.mxu0 0
        %1923 = vmatpush2.bf16.msra.mxu0 0
        %1924 = vmatprep.subr.bf16.mxu0 0
        %1925 = vmatpush2.bf16.msra.mxu0 0
        %1926 = vmatprep.subr.bf16.mxu0 0
        %1927 = vmatpush2.bf16.msra.mxu0 0
        %1928 = vmatprep.subr.bf16.mxu0 0
        %1929 = vmatpush2.bf16.msra.mxu0 0
        %1930 = vmatprep.subr.bf16.mxu0 0
        %1931 = vmatpush2.bf16.msra.mxu0 0
        %1932 = vmatprep.subr.bf16.mxu0 0
        %1933 = vmatpush2.bf16.msra.mxu0 0
        %1934 = vmatprep.subr.bf16.mxu0 0
        %1935 = vmatpush2.bf16.msra.mxu0 0
        %1936 = vmatprep.subr.bf16.mxu0 0
        %1937 = vmatpush2.bf16.msra.mxu0 0
        %1938 = vmatprep.mubr.bf16.mxu0 0
        %1939 = vmatmul.mubr.bf16.gmra.mxu0 %v1901
        %v1940 = vpop.f32.mrf.mxu0
        %v1941 = vadd.f32 0.0, %v1940
        %v1942 = vpop.f32.mrf.mxu0
        %v1943 = vpop.f32.mrf.mxu0
        %v1944 = vpop.f32.mrf.mxu0
        %1945 = vdwg.mxu0
        %1946 = vrot.lane.b32.xlu0 %v1640, 64
        %v1947 = vpop.permute.xlu0 %1946
        %v1949 = vsel %vm1647, %v1895, 0
        %v1952 = vsel %vm958, %v1947, 0
        %1954 = vmatprep.subr.bf16.mxu0 0
        %1955 = vmatpush1.bf16.msra.mxu0 0
        %1956 = vmatprep.subr.bf16.mxu0 0
        %1957 = vmatpush1.bf16.msra.mxu0 0
        %1958 = vmatprep.subr.bf16.mxu0 0
        %1959 = vmatpush1.bf16.msra.mxu0 0
        %1960 = vmatprep.subr.bf16.mxu0 0
        %1961 = vmatpush1.bf16.msra.mxu0 0
        %1962 = vmatprep.subr.bf16.mxu0 0
        %1963 = vmatpush1.bf16.msra.mxu0 0
        %1964 = vmatprep.subr.bf16.mxu0 0
        %1965 = vmatpush1.bf16.msra.mxu0 0
        %1966 = vmatprep.subr.bf16.mxu0 0
        %1967 = vmatpush1.bf16.msra.mxu0 0
        %1968 = vmatprep.subr.bf16.mxu0 0
        %1969 = vmatpush1.bf16.msra.mxu0 %v1952
        %1970 = vmatprep.subr.bf16.mxu0 0
        %1971 = vmatpush2.bf16.msra.mxu0 0
        %1972 = vmatprep.subr.bf16.mxu0 0
        %1973 = vmatpush2.bf16.msra.mxu0 0
        %1974 = vmatprep.subr.bf16.mxu0 0
        %1975 = vmatpush2.bf16.msra.mxu0 0
        %1976 = vmatprep.subr.bf16.mxu0 0
        %1977 = vmatpush2.bf16.msra.mxu0 0
        %1978 = vmatprep.subr.bf16.mxu0 0
        %1979 = vmatpush2.bf16.msra.mxu0 0
        %1980 = vmatprep.subr.bf16.mxu0 0
        %1981 = vmatpush2.bf16.msra.mxu0 0
        %1982 = vmatprep.subr.bf16.mxu0 0
        %1983 = vmatpush2.bf16.msra.mxu0 0
        %1984 = vmatprep.subr.bf16.mxu0 0
        %1985 = vmatpush2.bf16.msra.mxu0 0
        %1986 = vmatprep.mubr.bf16.mxu0 0
        %1987 = vmatmul.mubr.bf16.gmra.mxu0 %v1949
        %v1988 = vpop.f32.mrf.mxu0
        %v1989 = vadd.f32 0.0, %v1988
        %v1990 = vpop.f32.mrf.mxu0
        %v1991 = vpop.f32.mrf.mxu0
        %v1992 = vpop.f32.mrf.mxu0
        %1993 = vdwg.mxu0
        %1994 = vrot.lane.b32.xlu0 %v1642, 64
        %v1995 = vpop.permute.xlu0 %1994
        %v1997 = vsel %vm1647, %v1896, 0
        %v2000 = vsel %vm958, %v1995, 0
        %2002 = vmatprep.subr.bf16.mxu0 0
        %2003 = vmatpush1.bf16.msra.mxu0 0
        %2004 = vmatprep.subr.bf16.mxu0 0
        %2005 = vmatpush1.bf16.msra.mxu0 0
        %2006 = vmatprep.subr.bf16.mxu0 0
        %2007 = vmatpush1.bf16.msra.mxu0 0
        %2008 = vmatprep.subr.bf16.mxu0 0
        %2009 = vmatpush1.bf16.msra.mxu0 0
        %2010 = vmatprep.subr.bf16.mxu0 0
        %2011 = vmatpush1.bf16.msra.mxu0 0
        %2012 = vmatprep.subr.bf16.mxu0 0
        %2013 = vmatpush1.bf16.msra.mxu0 0
        %2014 = vmatprep.subr.bf16.mxu0 0
        %2015 = vmatpush1.bf16.msra.mxu0 0
        %2016 = vmatprep.subr.bf16.mxu0 0
        %2017 = vmatpush1.bf16.msra.mxu0 %v2000
        %2018 = vmatprep.subr.bf16.mxu0 0
        %2019 = vmatpush2.bf16.msra.mxu0 0
        %2020 = vmatprep.subr.bf16.mxu0 0
        %2021 = vmatpush2.bf16.msra.mxu0 0
        %2022 = vmatprep.subr.bf16.mxu0 0
        %2023 = vmatpush2.bf16.msra.mxu0 0
        %2024 = vmatprep.subr.bf16.mxu0 0
        %2025 = vmatpush2.bf16.msra.mxu0 0
        %2026 = vmatprep.subr.bf16.mxu0 0
        %2027 = vmatpush2.bf16.msra.mxu0 0
        %2028 = vmatprep.subr.bf16.mxu0 0
        %2029 = vmatpush2.bf16.msra.mxu0 0
        %2030 = vmatprep.subr.bf16.mxu0 0
        %2031 = vmatpush2.bf16.msra.mxu0 0
        %2032 = vmatprep.subr.bf16.mxu0 0
        %2033 = vmatpush2.bf16.msra.mxu0 0
        %2034 = vmatprep.mubr.bf16.mxu0 0
        %2035 = vmatmul.mubr.bf16.gmra.mxu0 %v1997
        %v2036 = vpop.f32.mrf.mxu0
        %v2037 = vadd.f32 0.0, %v2036
        %v2038 = vpop.f32.mrf.mxu0
        %v2039 = vpop.f32.mrf.mxu0
        %v2040 = vpop.f32.mrf.mxu0
        %2041 = vdwg.mxu0
        %2042 = vrot.lane.b32.xlu0 %v1644, 64
        %v2043 = vpop.permute.xlu0 %2042
        %v2045 = vsel %vm1647, %v1897, 0
        %v2048 = vsel %vm958, %v2043, 0
        %2050 = vmatprep.subr.bf16.mxu0 0
        %2051 = vmatpush1.bf16.msra.mxu0 0
        %2052 = vmatprep.subr.bf16.mxu0 0
        %2053 = vmatpush1.bf16.msra.mxu0 0
        %2054 = vmatprep.subr.bf16.mxu0 0
        %2055 = vmatpush1.bf16.msra.mxu0 0
        %2056 = vmatprep.subr.bf16.mxu0 0
        %2057 = vmatpush1.bf16.msra.mxu0 0
        %2058 = vmatprep.subr.bf16.mxu0 0
        %2059 = vmatpush1.bf16.msra.mxu0 0
        %2060 = vmatprep.subr.bf16.mxu0 0
        %2061 = vmatpush1.bf16.msra.mxu0 0
        %2062 = vmatprep.subr.bf16.mxu0 0
        %2063 = vmatpush1.bf16.msra.mxu0 0
        %2064 = vmatprep.subr.bf16.mxu0 0
        %2065 = vmatpush1.bf16.msra.mxu0 %v2048
        %2066 = vmatprep.subr.bf16.mxu0 0
        %2067 = vmatpush2.bf16.msra.mxu0 0
        %2068 = vmatprep.subr.bf16.mxu0 0
        %2069 = vmatpush2.bf16.msra.mxu0 0
        %2070 = vmatprep.subr.bf16.mxu0 0
        %2071 = vmatpush2.bf16.msra.mxu0 0
        %2072 = vmatprep.subr.bf16.mxu0 0
        %2073 = vmatpush2.bf16.msra.mxu0 0
        %2074 = vmatprep.subr.bf16.mxu0 0
        %2075 = vmatpush2.bf16.msra.mxu0 0
        %2076 = vmatprep.subr.bf16.mxu0 0
        %2077 = vmatpush2.bf16.msra.mxu0 0
        %2078 = vmatprep.subr.bf16.mxu0 0
        %2079 = vmatpush2.bf16.msra.mxu0 0
        %2080 = vmatprep.subr.bf16.mxu0 0
        %2081 = vmatpush2.bf16.msra.mxu0 0
        %2082 = vmatprep.mubr.bf16.mxu0 0
        %2083 = vmatmul.mubr.bf16.gmra.mxu0 %v2045
        %v2084 = vpop.f32.mrf.mxu0
        %v2085 = vadd.f32 0.0, %v2084
        %v2086 = vpop.f32.mrf.mxu0
        %v2087 = vpop.f32.mrf.mxu0
        %v2088 = vpop.f32.mrf.mxu0
        %2089 = vdwg.mxu0
        %v2090 = vpack.c.bf16 %v1941, %v1941
        %v2091 = vpack.c.bf16 %v1989, %v1989
        %v2092 = vpack.c.bf16 %v2037, %v2037
        %v2093 = vpack.c.bf16 %v2085, %v2085
        %2095 = vrot.lane.b32.xlu0 %v2091, 8
        %v2096 = vpop.permute.xlu0 %2095
        %2098 = vrot.lane.b32.xlu0 %v2092, 16
        %v2099 = vpop.permute.xlu0 %2098
        %2101 = vrot.lane.b32.xlu0 %v2093, 24
        %v2102 = vpop.permute.xlu0 %2101
        %v2105 = vsel %vm1647, %v2090, %v2096
        %vm2106 = vcmask 130048
        %v2108 = vsel %vm2106, %v2105, %v2099
        %vm2109 = vcmask 195584
        %v2111 = vsel %vm2109, %v2108, %v2102
        %v2112 = vld [vmem:[%s782] sm:$0xf]
        %v2113 = vld [vmem:[%s782 + $0x4] sm:$0xf]
        %v2114 = vld [vmem:[%s782 + $0x8] sm:$0xf]
        %v2115 = vld [vmem:[%s782 + $0xc] sm:$0xf]
        %v2120 = vunpack.c.l.b16 %v2112
        %v2121 = vunpack.c.l.b16 %v2113
        %v2122 = vunpack.c.l.b16 %v2114
        %v2123 = vunpack.c.l.b16 %v2115
        %v2124 = vpack.c.b16 %v2121, %v2120
        %v2125 = vpack.c.b16 %v2123, %v2122
        %v2128 = vsel %vm1546, %v2111, 0
        %2130 = vmatprep.subr.bf16.mxu0 0
        %2131 = vmatpush1.bf16.msra.mxu0 0
        %2132 = vmatprep.subr.bf16.mxu0 0
        %2133 = vmatpush1.bf16.msra.mxu0 0
        %2134 = vmatprep.subr.bf16.mxu0 0
        %2135 = vmatpush1.bf16.msra.mxu0 0
        %2136 = vmatprep.subr.bf16.mxu0 0
        %2137 = vmatpush1.bf16.msra.mxu0 0
        %2138 = vmatprep.subr.bf16.mxu0 0
        %2139 = vmatpush1.bf16.msra.mxu0 0
        %2140 = vmatprep.subr.bf16.mxu0 0
        %2141 = vmatpush1.bf16.msra.mxu0 0
        %2142 = vmatprep.subr.bf16.mxu0 0
        %2143 = vmatpush1.bf16.msra.mxu0 %v2125
        %2144 = vmatprep.subr.bf16.mxu0 0
        %2145 = vmatpush1.bf16.msra.mxu0 %v2124
        %2146 = vmatprep.subr.bf16.mxu0 0
        %2147 = vmatpush2.bf16.msra.mxu0 0
        %2148 = vmatprep.subr.bf16.mxu0 0
        %2149 = vmatpush2.bf16.msra.mxu0 0
        %2150 = vmatprep.subr.bf16.mxu0 0
        %2151 = vmatpush2.bf16.msra.mxu0 0
        %2152 = vmatprep.subr.bf16.mxu0 0
        %2153 = vmatpush2.bf16.msra.mxu0 0
        %2154 = vmatprep.subr.bf16.mxu0 0
        %2155 = vmatpush2.bf16.msra.mxu0 0
        %2156 = vmatprep.subr.bf16.mxu0 0
        %2157 = vmatpush2.bf16.msra.mxu0 0
        %2158 = vmatprep.subr.bf16.mxu0 0
        %2159 = vmatpush2.bf16.msra.mxu0 0
        %2160 = vmatprep.subr.bf16.mxu0 0
        %2161 = vmatpush2.bf16.msra.mxu0 0
        %2162 = vmatprep.mubr.bf16.mxu0 0
        %2163 = vmatmul.mubr.bf16.gmra.mxu0 %v2128
        %v2164 = vpop.f32.mrf.mxu0
        %v2165 = vadd.f32 0.0, %v2164
        %v2166 = vpop.f32.mrf.mxu0
        %v2167 = vpop.f32.mrf.mxu0
        %v2168 = vpop.f32.mrf.mxu0
        %2169 = vdwg.mxu0
        %v2170 = vadd.f32 %v812, %v2165
        %v2171 = vsel %vm1546, %v2170, 0.0
        %2172 = vadd.xlane.f32.xlu0 %v2171
        %v2173 = vpop.xlane.xlu0 %2172
        %v2174 = vmul.f32 %v2173, %v1550
        %v2175 = vsub.f32 %v2170, %v2174
        %v2176 = vmul.f32 %v2175, %v2175
        %v2177 = vsel %vm1546, %v2176, 0.0
        %2178 = vadd.xlane.f32.xlu0 %v2177
        %v2179 = vpop.xlane.xlu0 %2178
        %v2180 = vmul.f32 %v2179, %v1550
        %v2181 = vadd.f32 %v2180, 1e-05
        %v2182 = vrsqrt.pop %v2181
        %v2183 = vmul.f32 %v2175, %v2182
        %v2184 = vld [vmem:[%s653] sm:$0x1]
        %v2186 = vlaneseq
        %v2187 = vshrl.u32 %v2186, 7
        %v2188 = vsub.s32 0, %v2187
        %v2189 = vrot.slane %v2184, %v2188
        %v2191 = vmul.f32 %v2183, %v2189
        %v2192 = vld [vmem:[%s661] sm:$0x1]
        %v2194 = vlaneseq
        %v2195 = vshrl.u32 %v2194, 7
        %v2196 = vsub.s32 0, %v2195
        %v2197 = vrot.slane %v2192, %v2196
        %v2199 = vadd.f32 %v2191, %v2197
        %v2200 = vpack.c.bf16 %v2199, %v2199
        %v2201 = vld [vmem:[%s795] sm:$0xf]
        %v2202 = vld [vmem:[%s795 + $0x4] sm:$0xf]
        %v2203 = vld [vmem:[%s795 + $0x8] sm:$0xf]
        %v2204 = vld [vmem:[%s795 + $0xc] sm:$0xf]
        %v2205 = vld [vmem:[%s669] sm:$0x1]
        %v2207 = vlaneseq
        %v2208 = vshrl.u32 %v2207, 7
        %v2209 = vsub.s32 0, %v2208
        %v2210 = vrot.slane %v2205, %v2209
        %v2216 = vunpack.c.l.b16 %v2201
        %v2217 = vunpack.c.l.b16 %v2202
        %v2218 = vunpack.c.l.b16 %v2203
        %v2219 = vunpack.c.l.b16 %v2204
        %v2220 = vpack.c.b16 %v2217, %v2216
        %v2221 = vpack.c.b16 %v2219, %v2218
        %v2225 = vsel %vm1546, %v2200, 0
        %2227 = vmatprep.subr.bf16.mxu0 0
        %2228 = vmatpush1.bf16.msra.mxu0 0
        %2229 = vmatprep.subr.bf16.mxu0 0
        %2230 = vmatpush1.bf16.msra.mxu0 0
        %2231 = vmatprep.subr.bf16.mxu0 0
        %2232 = vmatpush1.bf16.msra.mxu0 0
        %2233 = vmatprep.subr.bf16.mxu0 0
        %2234 = vmatpush1.bf16.msra.mxu0 0
        %2235 = vmatprep.subr.bf16.mxu0 0
        %2236 = vmatpush1.bf16.msra.mxu0 0
        %2237 = vmatprep.subr.bf16.mxu0 0
        %2238 = vmatpush1.bf16.msra.mxu0 0
        %2239 = vmatprep.subr.bf16.mxu0 0
        %2240 = vmatpush1.bf16.msra.mxu0 %v2221
        %2241 = vmatprep.subr.bf16.mxu0 0
        %2242 = vmatpush1.bf16.msra.mxu0 %v2220
        %2243 = vmatprep.subr.bf16.mxu0 0
        %2244 = vmatpush2.bf16.msra.mxu0 0
        %2245 = vmatprep.subr.bf16.mxu0 0
        %2246 = vmatpush2.bf16.msra.mxu0 0
        %2247 = vmatprep.subr.bf16.mxu0 0
        %2248 = vmatpush2.bf16.msra.mxu0 0
        %2249 = vmatprep.subr.bf16.mxu0 0
        %2250 = vmatpush2.bf16.msra.mxu0 0
        %2251 = vmatprep.subr.bf16.mxu0 0
        %2252 = vmatpush2.bf16.msra.mxu0 0
        %2253 = vmatprep.subr.bf16.mxu0 0
        %2254 = vmatpush2.bf16.msra.mxu0 0
        %2255 = vmatprep.subr.bf16.mxu0 0
        %2256 = vmatpush2.bf16.msra.mxu0 0
        %2257 = vmatprep.subr.bf16.mxu0 0
        %2258 = vmatpush2.bf16.msra.mxu0 0
        %2259 = vmatprep.mubr.bf16.mxu0 0
        %2260 = vmatmul.mubr.bf16.gmra.mxu0 %v2225
        %v2261 = vpop.f32.mrf.mxu0
        %v2262 = vadd.f32 %v2210, %v2261
        %v2263 = vpop.f32.mrf.mxu0
        %v2264 = vpop.f32.mrf.mxu0
        %v2265 = vpop.f32.mrf.mxu0
        %2266 = vdwg.mxu0
        %v2267 = vmul.f32 %v2262, 0.5
        %v2268 = vmul.f32 %v2262, 0.044715
        %v2269 = vmul.f32 %v2268, %v2262
        %v2270 = vmul.f32 %v2269, %v2262
        %v2271 = vadd.f32 %v2262, %v2270
        %v2272 = vmul.f32 %v2271, 0.7978846
        %v2273 = vtanh.pop %v2272
        %v2274 = vadd.f32 %v2273, 1.0
        %v2275 = vmul.f32 %v2267, %v2274
        %v2276 = vpack.c.bf16 %v2275, %v2275
        %v2277 = vld [vmem:[%s800] sm:$0xf]
        %v2278 = vld [vmem:[%s800 + $0x4] sm:$0xf]
        %v2279 = vld [vmem:[%s800 + $0x8] sm:$0xf]
        %v2280 = vld [vmem:[%s800 + $0xc] sm:$0xf]
        %v2281 = vld [vmem:[%s800 + $0x10] sm:$0xf]
        %v2282 = vld [vmem:[%s800 + $0x14] sm:$0xf]
        %v2283 = vld [vmem:[%s800 + $0x18] sm:$0xf]
        %v2284 = vld [vmem:[%s800 + $0x1c] sm:$0xf]
        %v2285 = vld [vmem:[%s803] sm:$0x1]
        %v2287 = vlaneseq
        %v2288 = vshrl.u32 %v2287, 7
        %v2289 = vsub.s32 0, %v2288
        %v2290 = vrot.slane %v2285, %v2289
        %v2300 = vunpack.c.l.b16 %v2277
        %v2301 = vunpack.c.l.b16 %v2278
        %v2302 = vunpack.c.l.b16 %v2279
        %v2303 = vunpack.c.l.b16 %v2280
        %v2304 = vunpack.c.l.b16 %v2281
        %v2305 = vunpack.c.l.b16 %v2282
        %v2306 = vunpack.c.l.b16 %v2283
        %v2307 = vunpack.c.l.b16 %v2284
        %v2308 = vpack.c.b16 %v2301, %v2300
        %v2309 = vpack.c.b16 %v2303, %v2302
        %v2310 = vpack.c.b16 %v2305, %v2304
        %v2311 = vpack.c.b16 %v2307, %v2306
        %vm2316 = vcmask 523264
        %v2318 = vsel %vm2316, %v2276, 0
        %2320 = vmatprep.subr.bf16.mxu0 0
        %2321 = vmatpush1.bf16.msra.mxu0 0
        %2322 = vmatprep.subr.bf16.mxu0 0
        %2323 = vmatpush1.bf16.msra.mxu0 0
        %2324 = vmatprep.subr.bf16.mxu0 0
        %2325 = vmatpush1.bf16.msra.mxu0 0
        %2326 = vmatprep.subr.bf16.mxu0 0
        %2327 = vmatpush1.bf16.msra.mxu0 0
        %2328 = vmatprep.subr.bf16.mxu0 0
        %2329 = vmatpush1.bf16.msra.mxu0 %v2311
        %2330 = vmatprep.subr.bf16.mxu0 0
        %2331 = vmatpush1.bf16.msra.mxu0 %v2310
        %2332 = vmatprep.subr.bf16.mxu0 0
        %2333 = vmatpush1.bf16.msra.mxu0 %v2309
        %2334 = vmatprep.subr.bf16.mxu0 0
        %2335 = vmatpush1.bf16.msra.mxu0 %v2308
        %2336 = vmatprep.subr.bf16.mxu0 0
        %2337 = vmatpush2.bf16.msra.mxu0 0
        %2338 = vmatprep.subr.bf16.mxu0 0
        %2339 = vmatpush2.bf16.msra.mxu0 0
        %2340 = vmatprep.subr.bf16.mxu0 0
        %2341 = vmatpush2.bf16.msra.mxu0 0
        %2342 = vmatprep.subr.bf16.mxu0 0
        %2343 = vmatpush2.bf16.msra.mxu0 0
        %2344 = vmatprep.subr.bf16.mxu0 0
        %2345 = vmatpush2.bf16.msra.mxu0 0
        %2346 = vmatprep.subr.bf16.mxu0 0
        %2347 = vmatpush2.bf16.msra.mxu0 0
        %2348 = vmatprep.subr.bf16.mxu0 0
        %2349 = vmatpush2.bf16.msra.mxu0 0
        %2350 = vmatprep.subr.bf16.mxu0 0
        %2351 = vmatpush2.bf16.msra.mxu0 0
        %2352 = vmatprep.mubr.bf16.mxu0 0
        %2353 = vmatmul.mubr.bf16.gmra.mxu0 %v2318
        %v2354 = vpop.f32.mrf.mxu0
        %v2355 = vadd.f32 %v2290, %v2354
        %v2356 = vpop.f32.mrf.mxu0
        %v2357 = vpop.f32.mrf.mxu0
        %v2358 = vpop.f32.mrf.mxu0
        %2359 = vdwg.mxu0
        %v2360 = vadd.f32 %v2170, %v2355
        %2361 = vst.msk [vmem:[%s768] sm:$0xff] %vm1546, %v2360
        %s2362 = sand.u32 %s424, 1
        %s2363 = scalar_lea.sflag [#allocation4], %s2362
        %s2364 = sand.u32 %s424, 1
        %s2365 = smul.addr %s2364, 8
        %s2366 = scalar_lea.vmem [#allocation13], %s2365
        // Predicated region
        $region105: #{tpu_custom_call.1} parent=75 // pred_check
          %p2367 = pneg %p434
        $region106: #{tpu_custom_call.1} parent=75 // pred_check_branch
          %2369 = sbr.rel (%p2367) target = $region108
        $region107: #{tpu_custom_call.1} parent=75 // pred_region
          %s2371 = ssub.s32 128, 128
          %2372 = vsyncadd %s2363, %s2371
          %s2373 = smul.addr %s44, 128
          %s2374 = scalar_lea.hbm %s14, %s2373
          %s2376 = sshll.u32 %s2366, 4
          %s2377 = int_to_ptr.vmem [resolvable:$true] %s2376
          %2379 = dma.vmem_to_hbm [thread:$0]  %s2377, 128, %s2374, %s2363
        $region108: #{tpu_custom_call.1} parent=75 // pred_fallthru
          _
      $region76: #{tpu_custom_call.1} parent=5 // pred_fallthru
        _
      %p2380 = scmp.le.s32.totalorder 2, %s35
      // Predicated region
      $region109: #{tpu_custom_call.1} parent=5 // pred_check
        %p2381 = pneg %p2380
      $region110: #{tpu_custom_call.1} parent=5 // pred_check_branch
        %2383 = sbr.rel (%p2381) target = $region112
      $region111: #{tpu_custom_call.1} parent=5 // pred_region
        %s2384 = ssub.s32 %s35, 2
        // Predicated region
        $region113: #{tpu_custom_call.1} parent=111 // pred_check
          %p2385 = pneg %p440
        $region114: #{tpu_custom_call.1} parent=111 // pred_check_branch
          %2387 = sbr.rel (%p2385) target = $region116
        $region115: #{tpu_custom_call.1} parent=111 // pred_region
          %s2388 = sand.u32 %s425, 1
          %s2389 = scalar_lea.sflag [#allocation4], %s2388
          %s2390 = sand.u32 %s425, 1
          %s2391 = smul.addr %s2390, 8
          %s2392 = scalar_lea.vmem [#allocation13], %s2391
          %2393 = dma.done %s2389, 128
        $region116: #{tpu_custom_call.1} parent=111 // pred_fallthru
          _
      $region112: #{tpu_custom_call.1} parent=5 // pred_fallthru
        _
    $region6: #{tpu_custom_call.1} parent=1 // loop_footer
      %s39 = sadd.s32 1, %s35
    $region7: #{tpu_custom_call.1} parent=1 // loop_footer_branch
      %34 = sbr.rel target = $region3
    $region8: #{tpu_custom_call.1} parent=1 // loop_exit
      _
    %2394 = vsyncpa [#allocation3], 1
    %s2395 = scalar_lea.sflag [#allocation3], 1
    %2396 = vsyncpa %s2395, 1
    %2397 = vsyncpa [#allocation6], 1
    %s2398 = scalar_lea.sflag [#allocation6], 1
    %2399 = vsyncpa %s2398, 1
    %2400 = vsyncpa [#allocation9], 1
    %s2401 = scalar_lea.sflag [#allocation9], 1
    %2402 = vsyncpa %s2401, 1
    %2403 = vsyncpa [#allocation12], 1
    %s2404 = scalar_lea.sflag [#allocation12], 1
    %2405 = vsyncpa %s2404, 1
    %2406 = vsyncpa [#allocation4], 1
    %s2407 = scalar_lea.sflag [#allocation4], 1
    %2408 = vsyncpa %s2407, 1

</llo_original>
